<compile_context>
chip_gen: v5e
topology: v5e:2x2
jax: 0.10.0
libtpu: 0.0.40
codegen_flags: <defaults>
</compile_context>

<pallas_src>
import math

import jax
import jax.numpy as jnp
from jax.experimental import pallas as pl
from jax.experimental.pallas import tpu as pltpu


# ----------------------------------------------------------------------------
# Fused direction-pair LSTM kernel.
#   - grid = (num_time_chunks,), "arbitrary"; h/c carried in VMEM scratch
#   - input projection hoisted per chunk (one 2D matmul, M = Tc*B)
#   - both directions fused along the feature axis (striped block-diag weights)
#   Fused gate column layout (width 8H): [i_f i_b | f_f f_b | g_f g_b | o_f o_b]
#   Fused state layout (width 2H):       [h_f | h_b]
# ----------------------------------------------------------------------------
def _lstm_pair_kernel(lens_ref, x_ref, wih_ref, whh_ref, b_ref, h0_ref, c0_ref,
                      out_ref, hT_ref, cT_ref, xp_sc, h_sc, c_sc):
    # lens_ref: (B, 1) int32   valid length per batch row (shared by both dirs)
    # x_ref   : (Tc*B, 2In)    chunk rows, timestep-major within the chunk
    # wih_ref : (2In, 8H)      striped block-diagonal fwd/bwd input weights
    # whh_ref : (2H, 8H)       striped block-diagonal recurrent weights
    # b_ref   : (1, 8H)        fused bias (b_ih + b_hh, both directions)
    # h0/c0   : (B, 2H)        initial states [fwd | bwd]
    # out_ref : (Tc, B, 2H)    per-chunk outputs
    # hT/cT   : (B, 2H)        final states (written at the last chunk)
    chunk = pl.program_id(0)
    Tc, B, HH = out_ref.shape            # HH = 2H

    @pl.when(chunk == 0)
    def _():
        h_sc[...] = h0_ref[...]
        c_sc[...] = c0_ref[...]

    # Hoisted chunk input projection: one matmul, M = Tc*B (no HBM round-trip).
    xp_sc[...] = (jnp.dot(x_ref[...], wih_ref[...],
                          preferred_element_type=jnp.float32) + b_ref[...])

    whh = whh_ref[...]                   # (2H, 8H)
    lens = lens_ref[...]                 # (B, 1) int32
    t0 = chunk * Tc

    def step(t, carry):
        h_prev, c_prev = carry           # (B, 2H)
        row = pl.multiple_of(t * B, B)
        gates = xp_sc[pl.ds(row, B), :] + jnp.dot(
            h_prev, whh, preferred_element_type=jnp.float32)        # (B, 8H)
        # packed-sequence semantics: carry state through padding, zero the output
        m_t = ((t0 + t) < lens).astype(jnp.float32)                 # (B, 1)
        i_g = jax.nn.sigmoid(gates[:, 0 * HH:1 * HH])
        f_g = jax.nn.sigmoid(gates[:, 1 * HH:2 * HH])
        g_g = jnp.tanh(gates[:, 2 * HH:3 * HH])
        o_g = jax.nn.sigmoid(gates[:, 3 * HH:4 * HH])
        c_new = f_g * c_prev + i_g * g_g
        h_new = o_g * jnp.tanh(c_new)
        out_ref[t] = m_t * h_new
        h_upd = m_t * h_new + (1.0 - m_t) * h_prev
        c_upd = m_t * c_new + (1.0 - m_t) * c_prev
        return h_upd, c_upd

    hT, cT = jax.lax.fori_loop(0, Tc, step, (h_sc[...], c_sc[...]),
                               unroll=True if Tc <= 8 else 4)
    h_sc[...] = hT
    c_sc[...] = cT

    @pl.when(chunk == pl.num_programs(0) - 1)
    def _():
        hT_ref[...] = h_sc[...]
        cT_ref[...] = c_sc[...]


def lstm_pair(x_f_t, x_b_t, lens, pair, h0_f, h0_b, c0_f, c0_b, Tc):
    """Run a fused forward/backward LSTM pair over time-major inputs.

    x_f_t/x_b_t: (T, B, In) time-major inputs (the backward one already reversed)
    lens       : (B,) int32 valid lengths (T for un-packed semantics)
    pair       : fused weights {"wih": (2In,8H), "whh": (2H,8H), "b": (1,8H)}
    returns out_f, out_b (T,B,H) and hT_f, hT_b, cT_f, cT_b (B,H).
    """
    T, B, In = x_f_t.shape
    H = h0_f.shape[-1]
    HH, GG = 2 * H, 8 * H
    n_chunks = -(-T // Tc)
    T_pad = n_chunks * Tc

    x_cat = jnp.concatenate([x_f_t, x_b_t], axis=-1).astype(jnp.float32)  # (T,B,2In)
    x_cat = jnp.pad(x_cat, ((0, T_pad - T), (0, 0), (0, 0)))
    x_rows = x_cat.reshape(T_pad * B, 2 * In)

    h0 = jnp.concatenate([h0_f, h0_b], axis=-1).astype(jnp.float32)       # (B, 2H)
    c0 = jnp.concatenate([c0_f, c0_b], axis=-1).astype(jnp.float32)
    lens2 = lens.reshape(B, 1).astype(jnp.int32)

    out, hT, cT = pl.pallas_call(
        _lstm_pair_kernel,
        out_shape=(jax.ShapeDtypeStruct((T_pad, B, HH), jnp.float32),
                   jax.ShapeDtypeStruct((B, HH), jnp.float32),
                   jax.ShapeDtypeStruct((B, HH), jnp.float32)),
        grid_spec=pltpu.PrefetchScalarGridSpec(
            num_scalar_prefetch=0,
            grid=(n_chunks,),
            in_specs=[
                pl.BlockSpec((B, 1), lambda c: (0, 0)),                 # lengths
                pl.BlockSpec((Tc * B, 2 * In), lambda c: (c, 0)),       # x chunk
                pl.BlockSpec((2 * In, GG), lambda c: (0, 0)),           # Wih fused
                pl.BlockSpec((HH, GG), lambda c: (0, 0)),               # Whh fused
                pl.BlockSpec((1, GG), lambda c: (0, 0)),                # bias
                pl.BlockSpec((B, HH), lambda c: (0, 0)),                # h0
                pl.BlockSpec((B, HH), lambda c: (0, 0)),                # c0
            ],
            out_specs=(
                pl.BlockSpec((Tc, B, HH), lambda c: (c, 0, 0)),         # outputs
                pl.BlockSpec((B, HH), lambda c: (0, 0)),                # hT
                pl.BlockSpec((B, HH), lambda c: (0, 0)),                # cT
            ),
            scratch_shapes=[
                pltpu.VMEM((Tc * B, GG), jnp.float32),                  # xp chunk
                pltpu.VMEM((B, HH), jnp.float32),                       # h carry
                pltpu.VMEM((B, HH), jnp.float32),                       # c carry
            ]),
        compiler_params=pltpu.CompilerParams(
            dimension_semantics=("arbitrary",)),
    )(lens2, x_rows, pair["wih"], pair["whh"], pair["b"], h0, c0)

    out = out[:T]
    return (out[..., :H], out[..., H:],
            hT[:, :H], hT[:, H:], cT[:, :H], cT[:, H:])


# ----------------------------------------------------------------------------
# encode_b: MLP-scorer attention (flash-style streaming masked softmax over the
# source axis) fused with the S/V/C projections, pairwise max and W2.
# grid = (B "parallel", Sa_chunks "arbitrary"); per-query running max / denom /
# accumulator kept in VMEM scratch; all projections are flat 2D dots.
# ----------------------------------------------------------------------------
def _encode_b_kernel(lens_ref, cbce_ref, ka_ref, w1q_ref, w1k_ref, b1_ref,
                     w2s_ref, b2_ref, sv_ref, cproj_ref, w2_ref,
                     f_ref, hq_sc, m_sc, l_sc, acc_sc):
    b = pl.program_id(0)
    sa = pl.program_id(1)
    Dcb = w1q_ref.shape[0]
    Ta = ka_ref.shape[1]
    O = w2_ref.shape[0]

    cbce = cbce_ref[0]                   # (Sb, 2H + 2Eb)   [contexts_b ; ctx_emb]
    cb = cbce[:, :Dcb]                   # (Sb, 2H)  query = contexts_b
    ka = ka_ref[0]                       # (Ta, 2H)  keys = values = contexts_a chunk

    @pl.when(sa == 0)
    def _():
        hq_sc[...] = jnp.dot(cb, w1q_ref[...], preferred_element_type=jnp.float32)
        m_sc[...] = jnp.full(m_sc.shape, -1e30, m_sc.dtype)
        l_sc[...] = jnp.zeros(l_sc.shape, l_sc.dtype)
        acc_sc[...] = jnp.zeros(acc_sc.shape, acc_sc.dtype)

    # MLP scorer for this key chunk:
    # score[i,j] = tanh(w2 . tanh(W1q q_i + W1k k_j + b1) + b2)
    hk = jnp.dot(ka, w1k_ref[...], preferred_element_type=jnp.float32)       # (Ta, M)
    hidden = jnp.tanh(hq_sc[...][:, None, :] + hk[None, :, :] + b1_ref[...])  # (Sb,Ta,M)
    scores = jnp.tanh(jnp.sum(hidden * w2s_ref[...], axis=-1) + b2_ref[...])  # (Sb, Ta)

    # length mask (mask_a is the standard prefix padding mask); finite fill so
    # fully-padded rows stay finite (intentional divergence from -inf masked_fill).
    key_pos = sa * Ta + jax.lax.broadcasted_iota(jnp.int32, scores.shape, 1)
    scores = jnp.where(key_pos < lens_ref[b], scores, jnp.float32(-1e30))

    # streaming (online) masked softmax over the source axis
    m_new = jnp.maximum(m_sc[...], jnp.max(scores, axis=-1, keepdims=True))   # (Sb,1)
    alpha = jnp.exp(m_sc[...] - m_new)
    pexp = jnp.exp(scores - m_new)                                            # (Sb,Ta)
    l_sc[...] = alpha * l_sc[...] + jnp.sum(pexp, axis=-1, keepdims=True)
    acc_sc[...] = alpha * acc_sc[...] + jnp.dot(pexp, ka,
                                                preferred_element_type=jnp.float32)
    m_sc[...] = m_new

    @pl.when(sa == pl.num_programs(1) - 1)
    def _():
        attns = acc_sc[...] / l_sc[...]          # exact divide (f32 parity)
        # t_tilde = [contexts_b ; ctx_emb] @ [S;V] + attns @ C  (columns pre-permuted
        # evens-then-odds so the interleaved pairwise max is a half-split max)
        t_tilde = (jnp.dot(cbce, sv_ref[...], preferred_element_type=jnp.float32)
                   + jnp.dot(attns, cproj_ref[...],
                             preferred_element_type=jnp.float32))             # (Sb,2O)
        t = jnp.maximum(t_tilde[:, :O], t_tilde[:, O:])                       # (Sb, O)
        f_ref[0] = jnp.dot(t, w2_ref[...], preferred_element_type=jnp.float32)


def encode_b_pallas(contexts_b, ctx_b_emb, contexts_a, mask_a, p, sa_chunk=8):
    B, Sb, Dcb = contexts_b.shape
    Sa, Dka = contexts_a.shape[1], contexts_a.shape[2]
    O = p["W2"].shape[0]
    M = p["w1q"].shape[1]
    cbce = jnp.concatenate([contexts_b, ctx_b_emb], axis=-1).astype(jnp.float32)
    Dall = cbce.shape[-1]

    n_sa = -(-Sa // sa_chunk)
    Sa_pad = n_sa * sa_chunk
    ka = jnp.pad(contexts_a.astype(jnp.float32),
                 ((0, 0), (0, Sa_pad - Sa), (0, 0)))
    # TODO(synk): an arbitrary (non-prefix) mask_a would need streaming the mask;
    # here it is folded into per-row lengths (standard padding mask).
    lens_a = jnp.sum(mask_a.astype(jnp.int32), axis=1)                       # (B,)

    return pl.pallas_call(
        _encode_b_kernel,
        out_shape=jax.ShapeDtypeStruct((B, Sb, O), jnp.float32),
        grid_spec=pltpu.PrefetchScalarGridSpec(
            num_scalar_prefetch=1,
            grid=(B, n_sa),
            in_specs=[
                pl.BlockSpec((1, Sb, Dall), lambda b, s, L: (b, 0, 0)),
                pl.BlockSpec((1, sa_chunk, Dka), lambda b, s, L: (b, s, 0)),
                pl.BlockSpec((Dcb, M), lambda b, s, L: (0, 0)),
                pl.BlockSpec((Dka, M), lambda b, s, L: (0, 0)),
                pl.BlockSpec((1, M), lambda b, s, L: (0, 0)),
                pl.BlockSpec((1, M), lambda b, s, L: (0, 0)),
                pl.BlockSpec((1, 1), lambda b, s, L: (0, 0)),
                pl.BlockSpec((Dall, 2 * O), lambda b, s, L: (0, 0)),
                pl.BlockSpec((Dka, 2 * O), lambda b, s, L: (0, 0)),
                pl.BlockSpec((O, O), lambda b, s, L: (0, 0)),
            ],
            out_specs=pl.BlockSpec((1, Sb, O), lambda b, s, L: (b, 0, 0)),
            scratch_shapes=[
                pltpu.VMEM((Sb, M), jnp.float32),      # hq (query half of scorer)
                pltpu.VMEM((Sb, 1), jnp.float32),      # running max
                pltpu.VMEM((Sb, 1), jnp.float32),      # running denominator
                pltpu.VMEM((Sb, Dka), jnp.float32),    # running weighted values
            ]),
        compiler_params=pltpu.CompilerParams(
            dimension_semantics=("parallel", "arbitrary")),
    )(lens_a, cbce, ka,
      p["w1q"], p["w1k"], p["b1"], p["w2s"], p["b2"],
      p["SV"], p["C"], p["W2"])


# ----------------------------------------------------------------------------
# Plain-JAX glue: sequence reversal, layer stacking, padding, concatenation.
# ----------------------------------------------------------------------------
def reverse_padded_seq_tm(lengths, seq_tbf):
    """Reverse each padded sequence within its valid length (time-major data)."""
    T = seq_tbf.shape[0]
    pos = jnp.arange(T)[:, None]
    lens = lengths[None, :]
    rev = jnp.where(pos < lens, lens - pos - 1, pos)
    return jnp.take_along_axis(seq_tbf, rev[:, :, None], axis=0)


def bilstm_packed(x_btf, lengths, pairs, H, Tc):
    B, T, _ = x_btf.shape
    lens_i = lengths.astype(jnp.int32)
    inp_t = jnp.transpose(x_btf, (1, 0, 2)).astype(jnp.float32)      # (T, B, In)
    zeros = jnp.zeros((B, H), jnp.float32)
    hs, cs = [], []
    for pr in pairs:
        inp_rev = reverse_padded_seq_tm(lens_i, inp_t)
        out_f, out_b, hTf, hTb, cTf, cTb = lstm_pair(
            inp_t, inp_rev, lens_i, pr, zeros, zeros, zeros, zeros, Tc)
        out_b = reverse_padded_seq_tm(lens_i, out_b)
        inp_t = jnp.concatenate([out_f, out_b], axis=-1)
        hs += [hTf, hTb]
        cs += [cTf, cTb]
    contexts_a = jnp.transpose(inp_t, (1, 0, 2))                      # (B, T, 2H)
    return contexts_a, (jnp.stack(hs, 0), jnp.stack(cs, 0))


def contextualize_b(emb_b, lengths_b, pairs_b, h_f, c_f, h_b, c_b, Tc):
    B, T, _ = emb_b.shape
    lens_full = jnp.full((B,), T, jnp.int32)     # forward_b/backward_b run un-packed
    x_t = jnp.transpose(emb_b, (1, 0, 2)).astype(jnp.float32)
    inp_f = x_t
    inp_b = reverse_padded_seq_tm(lengths_b, x_t)
    for l, pr in enumerate(pairs_b):
        out_f, out_b, _, _, _, _ = lstm_pair(
            inp_f, inp_b, lens_full, pr, h_f[l], h_b[l], c_f[l], c_b[l], Tc)
        inp_f, inp_b = out_f, out_b
    fwd_ctx = jnp.transpose(inp_f, (1, 0, 2))
    bwd_ctx = jnp.transpose(reverse_padded_seq_tm(lengths_b, inp_b), (1, 0, 2))
    return fwd_ctx, bwd_ctx


def pad_zeros_around_timesteps(x):
    B, _, F = x.shape
    z = jnp.zeros((B, 1, F), x.dtype)
    return jnp.concatenate([z, x, z], axis=1)


def dual_sequences_encoder_forward(params, embeddings_a, lengths_a, mask_a,
                                   embeddings_b, lengths_b):
    H = params["hidden_size"]
    Tc = params["time_chunk"]

    # 1. bidirectional LSTM over A (packed-sequence semantics)
    contexts_a, (h, c) = bilstm_packed(
        embeddings_a, lengths_a, params["a_pairs"], H, Tc)

    # 2. split hidden into forward / backward parts (even / odd layer slots)
    h_f, c_f = h[0::2], c[0::2]
    h_b, c_b = h[1::2], c[1::2]

    # 3. contextualize B
    fwd_ctx, bwd_ctx = contextualize_b(
        embeddings_b, lengths_b, params["b_pairs"], h_f, c_f, h_b, c_b, Tc)
    post_QEFV = jnp.concatenate([fwd_ctx, bwd_ctx], axis=-1)

    # 4. encode B (non-buggy strategy: pad zeros around timesteps)
    fpad = pad_zeros_around_timesteps(fwd_ctx)
    bpad = pad_zeros_around_timesteps(bwd_ctx)
    epad = pad_zeros_around_timesteps(embeddings_b)
    contexts_b = jnp.concatenate([fpad[:, :-2], bpad[:, 2:]], axis=-1)
    ctx_b_emb = jnp.concatenate([epad[:, :-2], epad[:, 2:]], axis=-1)

    f = encode_b_pallas(contexts_b, ctx_b_emb, contexts_a, mask_a, params)
    return f, post_QEFV


# ----------------------------------------------------------------------------
# Deterministic parameter initialization (shapes from the module's __init__).
# Per-direction gate layout is [i | f | g | o]; the fused pair weights use the
# striped layout [i_f i_b | f_f f_b | g_f g_b | o_f o_b] along the 8H gate dim.
# ----------------------------------------------------------------------------
def _xavier(key, shape, fan_in, fan_out):
    bound = math.sqrt(6.0 / (fan_in + fan_out))
    return jax.random.uniform(key, shape, jnp.float32, -bound, bound)


def _make_lstm_layer(key, in_size, hidden):
    k1, k2, k3 = jax.random.split(key, 3)
    wih = _xavier(k1, (in_size, 4 * hidden), in_size, 4 * hidden)   # (In, 4H)
    whh = _xavier(k2, (hidden, 4 * hidden), hidden, 4 * hidden)     # (H, 4H)
    bnd = 1.0 / math.sqrt(hidden)
    bias = jax.random.uniform(k3, (1, 4 * hidden), jnp.float32, -bnd, bnd)  # b_ih+b_hh
    return {"wih": wih, "whh": whh, "b": bias}


def _fuse_direction_pair(pf, pb, H):
    """Fuse a fwd/bwd LSTM layer pair along the feature axis (striped block-diag)."""
    In = pf["wih"].shape[0]
    wih = jnp.zeros((2 * In, 8 * H), jnp.float32)
    whh = jnp.zeros((2 * H, 8 * H), jnp.float32)
    b = jnp.zeros((1, 8 * H), jnp.float32)
    for k in range(4):
        wih = wih.at[:In, 2 * k * H:(2 * k + 1) * H].set(pf["wih"][:, k * H:(k + 1) * H])
        wih = wih.at[In:, (2 * k + 1) * H:(2 * k + 2) * H].set(pb["wih"][:, k * H:(k + 1) * H])
        whh = whh.at[:H, 2 * k * H:(2 * k + 1) * H].set(pf["whh"][:, k * H:(k + 1) * H])
        whh = whh.at[H:, (2 * k + 1) * H:(2 * k + 2) * H].set(pb["whh"][:, k * H:(k + 1) * H])
        b = b.at[:, 2 * k * H:(2 * k + 1) * H].set(pf["b"][:, k * H:(k + 1) * H])
        b = b.at[:, (2 * k + 1) * H:(2 * k + 2) * H].set(pb["b"][:, k * H:(k + 1) * H])
    return {"wih": wih, "whh": whh, "b": b}


def init_params(key, Ea, Eb, H, O, L, time_chunk=8):
    keys = iter(jax.random.split(key, 64))
    p = {"hidden_size": H, "time_chunk": time_chunk, "a_pairs": [], "b_pairs": []}
    for l in range(L):
        in_a = Ea if l == 0 else 2 * H
        pf = _make_lstm_layer(next(keys), in_a, H)
        pb = _make_lstm_layer(next(keys), in_a, H)
        p["a_pairs"].append(_fuse_direction_pair(pf, pb, H))
    for l in range(L):
        in_b = Eb if l == 0 else H
        pf = _make_lstm_layer(next(keys), in_b, H)
        pb = _make_lstm_layer(next(keys), in_b, H)
        p["b_pairs"].append(_fuse_direction_pair(pf, pb, H))

    # MLPScorer(2H, 2H): Linear(4H -> 2H), Tanh, Linear(2H -> 1), Tanh
    # (concat order assumed [query ; keys])
    M = 2 * H
    w1 = _xavier(next(keys), (M, 4 * H), 4 * H, M)               # (out, in)
    p["w1q"] = jnp.transpose(w1[:, :2 * H])                      # (2H, M)
    p["w1k"] = jnp.transpose(w1[:, 2 * H:])                      # (2H, M)
    b1_bnd = 1.0 / math.sqrt(4 * H)
    p["b1"] = jax.random.uniform(next(keys), (1, M), jnp.float32, -b1_bnd, b1_bnd)
    p["w2s"] = _xavier(next(keys), (1, M), M, 1)
    b2_bnd = 1.0 / math.sqrt(M)
    p["b2"] = jax.random.uniform(next(keys), (1, 1), jnp.float32, -b2_bnd, b2_bnd)

    # S, V, C (columns permuted evens-then-odds so pairwise max = half-split max).
    # S and V are pre-fused row-wise for the concatenated [contexts_b ; ctx_emb].
    perm = jnp.concatenate([jnp.arange(0, 2 * O, 2), jnp.arange(1, 2 * O, 2)])
    S_w = _xavier(next(keys), (2 * H, 2 * O), 2 * H, 2 * O)
    V_w = _xavier(next(keys), (2 * Eb, 2 * O), 2 * Eb, 2 * O)
    C_w = _xavier(next(keys), (2 * H, 2 * O), 2 * H, 2 * O)
    p["SV"] = jnp.concatenate([S_w[:, perm], V_w[:, perm]], axis=0)  # (2H+2Eb, 2O)
    p["C"] = C_w[:, perm]                                            # (2H, 2O)
    p["W2"] = _xavier(next(keys), (O, O), O, O)
    return p


# ----------------------------------------------------------------------------
if __name__ == "__main__":
    key = jax.random.PRNGKey(0)
    B, Sa, Sb = 2, 10, 8
    Ea, Eb, H, O, L = 12, 12, 16, 16, 1   # num_layers=1 (dropout is a no-op in eval)

    kp, ka_key, kb_key = jax.random.split(key, 3)
    params = init_params(kp, Ea, Eb, H, O, L, time_chunk=8)

    embeddings_a = jax.random.normal(ka_key, (B, Sa, Ea), jnp.float32)
    embeddings_b = jax.random.normal(kb_key, (B, Sb, Eb), jnp.float32)
    lengths_a = jnp.array([Sa, 7], jnp.int32)
    lengths_b = jnp.array([Sb, 6], jnp.int32)
    mask_a = (jnp.arange(Sa)[None, :] < lengths_a[:, None]).astype(jnp.float32)

    f, post_QEFV = dual_sequences_encoder_forward(
        params, embeddings_a, lengths_a, mask_a, embeddings_b, lengths_b)
    jax.block_until_ready((f, post_QEFV))

    assert f.shape == (B, Sb, O)
    assert post_QEFV.shape == (B, Sb, 2 * H)
    assert bool(jnp.all(jnp.isfinite(f))) and bool(jnp.all(jnp.isfinite(post_QEFV)))
    print("KERNEL_OK")
</pallas_src>

<mosaic_0001>
module attributes {stable_mosaic.version = 11 : i64} {
  func.func @_lstm_pair_kernel(%arg0: i32, %arg1: memref<2x1xi32, #tpu.memory_space<vmem>>, %arg2: memref<16x24xf32, #tpu.memory_space<vmem>>, %arg3: memref<24x128xf32, #tpu.memory_space<vmem>>, %arg4: memref<32x128xf32, #tpu.memory_space<vmem>>, %arg5: memref<1x128xf32, #tpu.memory_space<vmem>>, %arg6: memref<2x32xf32, #tpu.memory_space<vmem>>, %arg7: memref<2x32xf32, #tpu.memory_space<vmem>>, %arg8: memref<8x2x32xf32, #tpu.memory_space<vmem>>, %arg9: memref<2x32xf32, #tpu.memory_space<vmem>>, %arg10: memref<2x32xf32, #tpu.memory_space<vmem>>, %arg11: memref<16x128xf32, #tpu.memory_space<vmem>>, %arg12: memref<2x32xf32, #tpu.memory_space<vmem>>, %arg13: memref<2x32xf32, #tpu.memory_space<vmem>>) attributes {dimension_semantics = [#tpu.dimension_semantics<arbitrary>], iteration_bounds = array<i64: 2>, scalar_prefetch = 0 : i64, scratch_operands = 3 : i64, tpu.core_type = #tpu.core_type<tc>, window_params = [{pipeline_mode = #tpu.pipeline_mode<synchronous>, transform_indices = @transform_0, window_bounds = array<i64: 2, 1>}, {transform_indices = @transform_1, window_bounds = array<i64: 16, 24>}, {pipeline_mode = #tpu.pipeline_mode<synchronous>, transform_indices = @transform_2, window_bounds = array<i64: 24, 128>}, {pipeline_mode = #tpu.pipeline_mode<synchronous>, transform_indices = @transform_3, window_bounds = array<i64: 32, 128>}, {pipeline_mode = #tpu.pipeline_mode<synchronous>, transform_indices = @transform_4, window_bounds = array<i64: 1, 128>}, {pipeline_mode = #tpu.pipeline_mode<synchronous>, transform_indices = @transform_5, window_bounds = array<i64: 2, 32>}, {pipeline_mode = #tpu.pipeline_mode<synchronous>, transform_indices = @transform_6, window_bounds = array<i64: 2, 32>}, {transform_indices = @transform_7, window_bounds = array<i64: 8, 2, 32>}, {pipeline_mode = #tpu.pipeline_mode<synchronous>, transform_indices = @transform_8, window_bounds = array<i64: 2, 32>}, {pipeline_mode = #tpu.pipeline_mode<synchronous>, transform_indices = @transform_9, window_bounds = array<i64: 2, 32>}]} {
    %c0_i32 = arith.constant 0 : i32
    %0 = arith.cmpi eq, %arg0, %c0_i32 : i32
    %1 = arith.extui %0 : i1 to i32
    %c0_i32_0 = arith.constant 0 : i32
    %2 = arith.cmpi ne, %1, %c0_i32_0 : i32
    scf.if %2 {
      %c0_104 = arith.constant 0 : index
      %c0_105 = arith.constant 0 : index
      %468 = vector.load %arg6[%c0_104, %c0_105] : memref<2x32xf32, #tpu.memory_space<vmem>>, vector<2x32xf32>
      %c0_106 = arith.constant 0 : index
      %c0_107 = arith.constant 0 : index
      %469 = vector.load %arg12[%c0_106, %c0_107] : memref<2x32xf32, #tpu.memory_space<vmem>>, vector<2x32xf32>
      tpu.vector_store %arg12[%c0_106, %c0_107], %468 {strides = array<i32>} : memref<2x32xf32, #tpu.memory_space<vmem>>, vector<2x32xf32>,
      %c0_108 = arith.constant 0 : index
      %c0_109 = arith.constant 0 : index
      %470 = vector.load %arg7[%c0_108, %c0_109] : memref<2x32xf32, #tpu.memory_space<vmem>>, vector<2x32xf32>
      %c0_110 = arith.constant 0 : index
      %c0_111 = arith.constant 0 : index
      %471 = vector.load %arg13[%c0_110, %c0_111] : memref<2x32xf32, #tpu.memory_space<vmem>>, vector<2x32xf32>
      tpu.vector_store %arg13[%c0_110, %c0_111], %470 {strides = array<i32>} : memref<2x32xf32, #tpu.memory_space<vmem>>, vector<2x32xf32>,
    } else {
    }
    %c0 = arith.constant 0 : index
    %c0_1 = arith.constant 0 : index
    %3 = vector.load %arg2[%c0, %c0_1] : memref<16x24xf32, #tpu.memory_space<vmem>>, vector<16x24xf32>
    %c0_2 = arith.constant 0 : index
    %c0_3 = arith.constant 0 : index
    %4 = vector.load %arg3[%c0_2, %c0_3] : memref<24x128xf32, #tpu.memory_space<vmem>>, vector<24x128xf32>
    %cst = arith.constant dense<0.000000e+00> : vector<16x128xf32>
    %5 = tpu.matmul %3, %4, %cst {dimension_numbers = #tpu.dot_dimension_numbers<[1], [0], [0], [1], [0, 0, 1, 1], [], []>} : vector<16x24xf32>, vector<24x128xf32>, vector<16x128xf32> -> vector<16x128xf32>
    %c0_4 = arith.constant 0 : index
    %c0_5 = arith.constant 0 : index
    %6 = vector.load %arg5[%c0_4, %c0_5] : memref<1x128xf32, #tpu.memory_space<vmem>>, vector<1x128xf32>
    %7 = vector.broadcast %6 : vector<1x128xf32> to vector<16x128xf32>
    %8 = arith.addf %5, %7 : vector<16x128xf32>
    %c0_6 = arith.constant 0 : index
    %c0_7 = arith.constant 0 : index
    %9 = vector.load %arg11[%c0_6, %c0_7] : memref<16x128xf32, #tpu.memory_space<vmem>>, vector<16x128xf32>
    tpu.vector_store %arg11[%c0_6, %c0_7], %8 {strides = array<i32>} : memref<16x128xf32, #tpu.memory_space<vmem>>, vector<16x128xf32>,
    %c0_8 = arith.constant 0 : index
    %c0_9 = arith.constant 0 : index
    %10 = vector.load %arg4[%c0_8, %c0_9] : memref<32x128xf32, #tpu.memory_space<vmem>>, vector<32x128xf32>
    %c0_10 = arith.constant 0 : index
    %c0_11 = arith.constant 0 : index
    %11 = vector.load %arg1[%c0_10, %c0_11] : memref<2x1xi32, #tpu.memory_space<vmem>>, vector<2x1xi32>
    %c8_i32 = arith.constant 8 : i32
    %12 = arith.muli %arg0, %c8_i32 : i32
    %c0_12 = arith.constant 0 : index
    %c0_13 = arith.constant 0 : index
    %13 = vector.load %arg12[%c0_12, %c0_13] : memref<2x32xf32, #tpu.memory_space<vmem>>, vector<2x32xf32>
    %c0_14 = arith.constant 0 : index
    %c0_15 = arith.constant 0 : index
    %14 = vector.load %arg13[%c0_14, %c0_15] : memref<2x32xf32, #tpu.memory_space<vmem>>, vector<2x32xf32>
    %c0_i32_16 = arith.constant 0 : i32
    %c2_i32 = arith.constant 2 : i32
    %15 = arith.muli %c0_i32_16, %c2_i32 : i32
    %16 = tpu.assume_multiple %15, 2 : i32
    %17 = arith.index_cast %16 : i32 to index
    %c0_17 = arith.constant 0 : index
    %18 = vector.load %arg11[%17, %c0_17] : memref<16x128xf32, #tpu.memory_space<vmem>>, vector<2x128xf32>
    %cst_18 = arith.constant dense<0.000000e+00> : vector<2x128xf32>
    %19 = tpu.matmul %13, %10, %cst_18 {dimension_numbers = #tpu.dot_dimension_numbers<[1], [0], [0], [1], [0, 0, 1, 1], [], []>} : vector<2x32xf32>, vector<32x128xf32>, vector<2x128xf32> -> vector<2x128xf32>
    %20 = arith.addf %18, %19 : vector<2x128xf32>
    %21 = arith.addi %12, %c0_i32_16 : i32
    %22 = vector.broadcast %21 : i32 to vector<2x1xi32>
    %23 = arith.cmpi slt, %22, %11 : vector<2x1xi32>
    %24 = arith.extui %23 : vector<2x1xi1> to vector<2x1xi32>
    %25 = arith.sitofp %24 : vector<2x1xi32> to vector<2x1xf32>
    %26 = vector.extract_strided_slice %20 {offsets = [0, 0], sizes = [2, 32], strides = [1, 1]} : vector<2x128xf32> to vector<2x32xf32>
    %27 = arith.negf %26 : vector<2x32xf32>
    %28 = math.exp %27 : vector<2x32xf32>
    %cst_19 = arith.constant 1.000000e+00 : f32
    %29 = vector.broadcast %cst_19 : f32 to vector<2x32xf32>
    %30 = arith.addf %29, %28 : vector<2x32xf32>
    %31 = arith.divf %29, %30 : vector<2x32xf32>
    %32 = vector.extract_strided_slice %20 {offsets = [0, 32], sizes = [2, 32], strides = [1, 1]} : vector<2x128xf32> to vector<2x32xf32>
    %33 = arith.negf %32 : vector<2x32xf32>
    %34 = math.exp %33 : vector<2x32xf32>
    %cst_20 = arith.constant 1.000000e+00 : f32
    %35 = vector.broadcast %cst_20 : f32 to vector<2x32xf32>
    %36 = arith.addf %35, %34 : vector<2x32xf32>
    %37 = arith.divf %35, %36 : vector<2x32xf32>
    %38 = vector.extract_strided_slice %20 {offsets = [0, 64], sizes = [2, 32], strides = [1, 1]} : vector<2x128xf32> to vector<2x32xf32>
    %39 = math.tanh %38 : vector<2x32xf32>
    %40 = vector.extract_strided_slice %20 {offsets = [0, 96], sizes = [2, 32], strides = [1, 1]} : vector<2x128xf32> to vector<2x32xf32>
    %41 = arith.negf %40 : vector<2x32xf32>
    %42 = math.exp %41 : vector<2x32xf32>
    %cst_21 = arith.constant 1.000000e+00 : f32
    %43 = vector.broadcast %cst_21 : f32 to vector<2x32xf32>
    %44 = arith.addf %43, %42 : vector<2x32xf32>
    %45 = arith.divf %43, %44 : vector<2x32xf32>
    %46 = arith.mulf %37, %14 : vector<2x32xf32>
    %47 = arith.mulf %31, %39 : vector<2x32xf32>
    %48 = arith.addf %46, %47 : vector<2x32xf32>
    %49 = math.tanh %48 : vector<2x32xf32>
    %50 = arith.mulf %45, %49 : vector<2x32xf32>
    %51 = vector.broadcast %25 : vector<2x1xf32> to vector<2x32xf32>
    %52 = arith.mulf %51, %50 : vector<2x32xf32>
    %53 = arith.index_cast %c0_i32_16 : i32 to index
    %c0_22 = arith.constant 0 : index
    %c0_23 = arith.constant 0 : index
    %54 = vector.load %arg8[%53, %c0_22, %c0_23] : memref<8x2x32xf32, #tpu.memory_space<vmem>>, vector<1x2x32xf32>
    %55 = vector.shape_cast %54 : vector<1x2x32xf32> to vector<2x32xf32>
    %56 = vector.shape_cast %52 : vector<2x32xf32> to vector<1x2x32xf32>
    tpu.vector_store %arg8[%53, %c0_22, %c0_23], %56 {strides = array<i32>} : memref<8x2x32xf32, #tpu.memory_space<vmem>>, vector<1x2x32xf32>,
    %57 = vector.broadcast %25 : vector<2x1xf32> to vector<2x32xf32>
    %58 = arith.mulf %57, %50 : vector<2x32xf32>
    %cst_24 = arith.constant 1.000000e+00 : f32
    %59 = vector.broadcast %cst_24 : f32 to vector<2x1xf32>
    %60 = arith.subf %59, %25 : vector<2x1xf32>
    %61 = vector.broadcast %60 : vector<2x1xf32> to vector<2x32xf32>
    %62 = arith.mulf %61, %13 : vector<2x32xf32>
    %63 = arith.addf %58, %62 : vector<2x32xf32>
    %64 = vector.broadcast %25 : vector<2x1xf32> to vector<2x32xf32>
    %65 = arith.mulf %64, %48 : vector<2x32xf32>
    %cst_25 = arith.constant 1.000000e+00 : f32
    %66 = vector.broadcast %cst_25 : f32 to vector<2x1xf32>
    %67 = arith.subf %66, %25 : vector<2x1xf32>
    %68 = vector.broadcast %67 : vector<2x1xf32> to vector<2x32xf32>
    %69 = arith.mulf %68, %14 : vector<2x32xf32>
    %70 = arith.addf %65, %69 : vector<2x32xf32>
    %c1_i32 = arith.constant 1 : i32
    %c2_i32_26 = arith.constant 2 : i32
    %71 = arith.muli %c1_i32, %c2_i32_26 : i32
    %72 = tpu.assume_multiple %71, 2 : i32
    %73 = arith.index_cast %72 : i32 to index
    %c0_27 = arith.constant 0 : index
    %74 = vector.load %arg11[%73, %c0_27] : memref<16x128xf32, #tpu.memory_space<vmem>>, vector<2x128xf32>
    %cst_28 = arith.constant dense<0.000000e+00> : vector<2x128xf32>
    %75 = tpu.matmul %63, %10, %cst_28 {dimension_numbers = #tpu.dot_dimension_numbers<[1], [0], [0], [1], [0, 0, 1, 1], [], []>} : vector<2x32xf32>, vector<32x128xf32>, vector<2x128xf32> -> vector<2x128xf32>
    %76 = arith.addf %74, %75 : vector<2x128xf32>
    %77 = arith.addi %12, %c1_i32 : i32
    %78 = vector.broadcast %77 : i32 to vector<2x1xi32>
    %79 = arith.cmpi slt, %78, %11 : vector<2x1xi32>
    %80 = arith.extui %79 : vector<2x1xi1> to vector<2x1xi32>
    %81 = arith.sitofp %80 : vector<2x1xi32> to vector<2x1xf32>
    %82 = vector.extract_strided_slice %76 {offsets = [0, 0], sizes = [2, 32], strides = [1, 1]} : vector<2x128xf32> to vector<2x32xf32>
    %83 = arith.negf %82 : vector<2x32xf32>
    %84 = math.exp %83 : vector<2x32xf32>
    %cst_29 = arith.constant 1.000000e+00 : f32
    %85 = vector.broadcast %cst_29 : f32 to vector<2x32xf32>
    %86 = arith.addf %85, %84 : vector<2x32xf32>
    %87 = arith.divf %85, %86 : vector<2x32xf32>
    %88 = vector.extract_strided_slice %76 {offsets = [0, 32], sizes = [2, 32], strides = [1, 1]} : vector<2x128xf32> to vector<2x32xf32>
    %89 = arith.negf %88 : vector<2x32xf32>
    %90 = math.exp %89 : vector<2x32xf32>
    %cst_30 = arith.constant 1.000000e+00 : f32
    %91 = vector.broadcast %cst_30 : f32 to vector<2x32xf32>
    %92 = arith.addf %91, %90 : vector<2x32xf32>
    %93 = arith.divf %91, %92 : vector<2x32xf32>
    %94 = vector.extract_strided_slice %76 {offsets = [0, 64], sizes = [2, 32], strides = [1, 1]} : vector<2x128xf32> to vector<2x32xf32>
    %95 = math.tanh %94 : vector<2x32xf32>
    %96 = vector.extract_strided_slice %76 {offsets = [0, 96], sizes = [2, 32], strides = [1, 1]} : vector<2x128xf32> to vector<2x32xf32>
    %97 = arith.negf %96 : vector<2x32xf32>
    %98 = math.exp %97 : vector<2x32xf32>
    %cst_31 = arith.constant 1.000000e+00 : f32
    %99 = vector.broadcast %cst_31 : f32 to vector<2x32xf32>
    %100 = arith.addf %99, %98 : vector<2x32xf32>
    %101 = arith.divf %99, %100 : vector<2x32xf32>
    %102 = arith.mulf %93, %70 : vector<2x32xf32>
    %103 = arith.mulf %87, %95 : vector<2x32xf32>
    %104 = arith.addf %102, %103 : vector<2x32xf32>
    %105 = math.tanh %104 : vector<2x32xf32>
    %106 = arith.mulf %101, %105 : vector<2x32xf32>
    %107 = vector.broadcast %81 : vector<2x1xf32> to vector<2x32xf32>
    %108 = arith.mulf %107, %106 : vector<2x32xf32>
    %109 = arith.index_cast %c1_i32 : i32 to index
    %c0_32 = arith.constant 0 : index
    %c0_33 = arith.constant 0 : index
    %110 = vector.load %arg8[%109, %c0_32, %c0_33] : memref<8x2x32xf32, #tpu.memory_space<vmem>>, vector<1x2x32xf32>
    %111 = vector.shape_cast %110 : vector<1x2x32xf32> to vector<2x32xf32>
    %112 = vector.shape_cast %108 : vector<2x32xf32> to vector<1x2x32xf32>
    tpu.vector_store %arg8[%109, %c0_32, %c0_33], %112 {strides = array<i32>} : memref<8x2x32xf32, #tpu.memory_space<vmem>>, vector<1x2x32xf32>,
    %113 = vector.broadcast %81 : vector<2x1xf32> to vector<2x32xf32>
    %114 = arith.mulf %113, %106 : vector<2x32xf32>
    %cst_34 = arith.constant 1.000000e+00 : f32
    %115 = vector.broadcast %cst_34 : f32 to vector<2x1xf32>
    %116 = arith.subf %115, %81 : vector<2x1xf32>
    %117 = vector.broadcast %116 : vector<2x1xf32> to vector<2x32xf32>
    %118 = arith.mulf %117, %63 : vector<2x32xf32>
    %119 = arith.addf %114, %118 : vector<2x32xf32>
    %120 = vector.broadcast %81 : vector<2x1xf32> to vector<2x32xf32>
    %121 = arith.mulf %120, %104 : vector<2x32xf32>
    %cst_35 = arith.constant 1.000000e+00 : f32
    %122 = vector.broadcast %cst_35 : f32 to vector<2x1xf32>
    %123 = arith.subf %122, %81 : vector<2x1xf32>
    %124 = vector.broadcast %123 : vector<2x1xf32> to vector<2x32xf32>
    %125 = arith.mulf %124, %70 : vector<2x32xf32>
    %126 = arith.addf %121, %125 : vector<2x32xf32>
    %c2_i32_36 = arith.constant 2 : i32
    %c2_i32_37 = arith.constant 2 : i32
    %127 = arith.muli %c2_i32_36, %c2_i32_37 : i32
    %128 = tpu.assume_multiple %127, 2 : i32
    %129 = arith.index_cast %128 : i32 to index
    %c0_38 = arith.constant 0 : index
    %130 = vector.load %arg11[%129, %c0_38] : memref<16x128xf32, #tpu.memory_space<vmem>>, vector<2x128xf32>
    %cst_39 = arith.constant dense<0.000000e+00> : vector<2x128xf32>
    %131 = tpu.matmul %119, %10, %cst_39 {dimension_numbers = #tpu.dot_dimension_numbers<[1], [0], [0], [1], [0, 0, 1, 1], [], []>} : vector<2x32xf32>, vector<32x128xf32>, vector<2x128xf32> -> vector<2x128xf32>
    %132 = arith.addf %130, %131 : vector<2x128xf32>
    %133 = arith.addi %12, %c2_i32_36 : i32
    %134 = vector.broadcast %133 : i32 to vector<2x1xi32>
    %135 = arith.cmpi slt, %134, %11 : vector<2x1xi32>
    %136 = arith.extui %135 : vector<2x1xi1> to vector<2x1xi32>
    %137 = arith.sitofp %136 : vector<2x1xi32> to vector<2x1xf32>
    %138 = vector.extract_strided_slice %132 {offsets = [0, 0], sizes = [2, 32], strides = [1, 1]} : vector<2x128xf32> to vector<2x32xf32>
    %139 = arith.negf %138 : vector<2x32xf32>
    %140 = math.exp %139 : vector<2x32xf32>
    %cst_40 = arith.constant 1.000000e+00 : f32
    %141 = vector.broadcast %cst_40 : f32 to vector<2x32xf32>
    %142 = arith.addf %141, %140 : vector<2x32xf32>
    %143 = arith.divf %141, %142 : vector<2x32xf32>
    %144 = vector.extract_strided_slice %132 {offsets = [0, 32], sizes = [2, 32], strides = [1, 1]} : vector<2x128xf32> to vector<2x32xf32>
    %145 = arith.negf %144 : vector<2x32xf32>
    %146 = math.exp %145 : vector<2x32xf32>
    %cst_41 = arith.constant 1.000000e+00 : f32
    %147 = vector.broadcast %cst_41 : f32 to vector<2x32xf32>
    %148 = arith.addf %147, %146 : vector<2x32xf32>
    %149 = arith.divf %147, %148 : vector<2x32xf32>
    %150 = vector.extract_strided_slice %132 {offsets = [0, 64], sizes = [2, 32], strides = [1, 1]} : vector<2x128xf32> to vector<2x32xf32>
    %151 = math.tanh %150 : vector<2x32xf32>
    %152 = vector.extract_strided_slice %132 {offsets = [0, 96], sizes = [2, 32], strides = [1, 1]} : vector<2x128xf32> to vector<2x32xf32>
    %153 = arith.negf %152 : vector<2x32xf32>
    %154 = math.exp %153 : vector<2x32xf32>
    %cst_42 = arith.constant 1.000000e+00 : f32
    %155 = vector.broadcast %cst_42 : f32 to vector<2x32xf32>
    %156 = arith.addf %155, %154 : vector<2x32xf32>
    %157 = arith.divf %155, %156 : vector<2x32xf32>
    %158 = arith.mulf %149, %126 : vector<2x32xf32>
    %159 = arith.mulf %143, %151 : vector<2x32xf32>
    %160 = arith.addf %158, %159 : vector<2x32xf32>
    %161 = math.tanh %160 : vector<2x32xf32>
    %162 = arith.mulf %157, %161 : vector<2x32xf32>
    %163 = vector.broadcast %137 : vector<2x1xf32> to vector<2x32xf32>
    %164 = arith.mulf %163, %162 : vector<2x32xf32>
    %165 = arith.index_cast %c2_i32_36 : i32 to index
    %c0_43 = arith.constant 0 : index
    %c0_44 = arith.constant 0 : index
    %166 = vector.load %arg8[%165, %c0_43, %c0_44] : memref<8x2x32xf32, #tpu.memory_space<vmem>>, vector<1x2x32xf32>
    %167 = vector.shape_cast %166 : vector<1x2x32xf32> to vector<2x32xf32>
    %168 = vector.shape_cast %164 : vector<2x32xf32> to vector<1x2x32xf32>
    tpu.vector_store %arg8[%165, %c0_43, %c0_44], %168 {strides = array<i32>} : memref<8x2x32xf32, #tpu.memory_space<vmem>>, vector<1x2x32xf32>,
    %169 = vector.broadcast %137 : vector<2x1xf32> to vector<2x32xf32>
    %170 = arith.mulf %169, %162 : vector<2x32xf32>
    %cst_45 = arith.constant 1.000000e+00 : f32
    %171 = vector.broadcast %cst_45 : f32 to vector<2x1xf32>
    %172 = arith.subf %171, %137 : vector<2x1xf32>
    %173 = vector.broadcast %172 : vector<2x1xf32> to vector<2x32xf32>
    %174 = arith.mulf %173, %119 : vector<2x32xf32>
    %175 = arith.addf %170, %174 : vector<2x32xf32>
    %176 = vector.broadcast %137 : vector<2x1xf32> to vector<2x32xf32>
    %177 = arith.mulf %176, %160 : vector<2x32xf32>
    %cst_46 = arith.constant 1.000000e+00 : f32
    %178 = vector.broadcast %cst_46 : f32 to vector<2x1xf32>
    %179 = arith.subf %178, %137 : vector<2x1xf32>
    %180 = vector.broadcast %179 : vector<2x1xf32> to vector<2x32xf32>
    %181 = arith.mulf %180, %126 : vector<2x32xf32>
    %182 = arith.addf %177, %181 : vector<2x32xf32>
    %c3_i32 = arith.constant 3 : i32
    %c2_i32_47 = arith.constant 2 : i32
    %183 = arith.muli %c3_i32, %c2_i32_47 : i32
    %184 = tpu.assume_multiple %183, 2 : i32
    %185 = arith.index_cast %184 : i32 to index
    %c0_48 = arith.constant 0 : index
    %186 = vector.load %arg11[%185, %c0_48] : memref<16x128xf32, #tpu.memory_space<vmem>>, vector<2x128xf32>
    %cst_49 = arith.constant dense<0.000000e+00> : vector<2x128xf32>
    %187 = tpu.matmul %175, %10, %cst_49 {dimension_numbers = #tpu.dot_dimension_numbers<[1], [0], [0], [1], [0, 0, 1, 1], [], []>} : vector<2x32xf32>, vector<32x128xf32>, vector<2x128xf32> -> vector<2x128xf32>
    %188 = arith.addf %186, %187 : vector<2x128xf32>
    %189 = arith.addi %12, %c3_i32 : i32
    %190 = vector.broadcast %189 : i32 to vector<2x1xi32>
    %191 = arith.cmpi slt, %190, %11 : vector<2x1xi32>
    %192 = arith.extui %191 : vector<2x1xi1> to vector<2x1xi32>
    %193 = arith.sitofp %192 : vector<2x1xi32> to vector<2x1xf32>
    %194 = vector.extract_strided_slice %188 {offsets = [0, 0], sizes = [2, 32], strides = [1, 1]} : vector<2x128xf32> to vector<2x32xf32>
    %195 = arith.negf %194 : vector<2x32xf32>
    %196 = math.exp %195 : vector<2x32xf32>
    %cst_50 = arith.constant 1.000000e+00 : f32
    %197 = vector.broadcast %cst_50 : f32 to vector<2x32xf32>
    %198 = arith.addf %197, %196 : vector<2x32xf32>
    %199 = arith.divf %197, %198 : vector<2x32xf32>
    %200 = vector.extract_strided_slice %188 {offsets = [0, 32], sizes = [2, 32], strides = [1, 1]} : vector<2x128xf32> to vector<2x32xf32>
    %201 = arith.negf %200 : vector<2x32xf32>
    %202 = math.exp %201 : vector<2x32xf32>
    %cst_51 = arith.constant 1.000000e+00 : f32
    %203 = vector.broadcast %cst_51 : f32 to vector<2x32xf32>
    %204 = arith.addf %203, %202 : vector<2x32xf32>
    %205 = arith.divf %203, %204 : vector<2x32xf32>
    %206 = vector.extract_strided_slice %188 {offsets = [0, 64], sizes = [2, 32], strides = [1, 1]} : vector<2x128xf32> to vector<2x32xf32>
    %207 = math.tanh %206 : vector<2x32xf32>
    %208 = vector.extract_strided_slice %188 {offsets = [0, 96], sizes = [2, 32], strides = [1, 1]} : vector<2x128xf32> to vector<2x32xf32>
    %209 = arith.negf %208 : vector<2x32xf32>
    %210 = math.exp %209 : vector<2x32xf32>
    %cst_52 = arith.constant 1.000000e+00 : f32
    %211 = vector.broadcast %cst_52 : f32 to vector<2x32xf32>
    %212 = arith.addf %211, %210 : vector<2x32xf32>
    %213 = arith.divf %211, %212 : vector<2x32xf32>
    %214 = arith.mulf %205, %182 : vector<2x32xf32>
    %215 = arith.mulf %199, %207 : vector<2x32xf32>
    %216 = arith.addf %214, %215 : vector<2x32xf32>
    %217 = math.tanh %216 : vector<2x32xf32>
    %218 = arith.mulf %213, %217 : vector<2x32xf32>
    %219 = vector.broadcast %193 : vector<2x1xf32> to vector<2x32xf32>
    %220 = arith.mulf %219, %218 : vector<2x32xf32>
    %221 = arith.index_cast %c3_i32 : i32 to index
    %c0_53 = arith.constant 0 : index
    %c0_54 = arith.constant 0 : index
    %222 = vector.load %arg8[%221, %c0_53, %c0_54] : memref<8x2x32xf32, #tpu.memory_space<vmem>>, vector<1x2x32xf32>
    %223 = vector.shape_cast %222 : vector<1x2x32xf32> to vector<2x32xf32>
    %224 = vector.shape_cast %220 : vector<2x32xf32> to vector<1x2x32xf32>
    tpu.vector_store %arg8[%221, %c0_53, %c0_54], %224 {strides = array<i32>} : memref<8x2x32xf32, #tpu.memory_space<vmem>>, vector<1x2x32xf32>,
    %225 = vector.broadcast %193 : vector<2x1xf32> to vector<2x32xf32>
    %226 = arith.mulf %225, %218 : vector<2x32xf32>
    %cst_55 = arith.constant 1.000000e+00 : f32
    %227 = vector.broadcast %cst_55 : f32 to vector<2x1xf32>
    %228 = arith.subf %227, %193 : vector<2x1xf32>
    %229 = vector.broadcast %228 : vector<2x1xf32> to vector<2x32xf32>
    %230 = arith.mulf %229, %175 : vector<2x32xf32>
    %231 = arith.addf %226, %230 : vector<2x32xf32>
    %232 = vector.broadcast %193 : vector<2x1xf32> to vector<2x32xf32>
    %233 = arith.mulf %232, %216 : vector<2x32xf32>
    %cst_56 = arith.constant 1.000000e+00 : f32
    %234 = vector.broadcast %cst_56 : f32 to vector<2x1xf32>
    %235 = arith.subf %234, %193 : vector<2x1xf32>
    %236 = vector.broadcast %235 : vector<2x1xf32> to vector<2x32xf32>
    %237 = arith.mulf %236, %182 : vector<2x32xf32>
    %238 = arith.addf %233, %237 : vector<2x32xf32>
    %c4_i32 = arith.constant 4 : i32
    %c2_i32_57 = arith.constant 2 : i32
    %239 = arith.muli %c4_i32, %c2_i32_57 : i32
    %240 = tpu.assume_multiple %239, 2 : i32
    %241 = arith.index_cast %240 : i32 to index
    %c0_58 = arith.constant 0 : index
    %242 = vector.load %arg11[%241, %c0_58] : memref<16x128xf32, #tpu.memory_space<vmem>>, vector<2x128xf32>
    %cst_59 = arith.constant dense<0.000000e+00> : vector<2x128xf32>
    %243 = tpu.matmul %231, %10, %cst_59 {dimension_numbers = #tpu.dot_dimension_numbers<[1], [0], [0], [1], [0, 0, 1, 1], [], []>} : vector<2x32xf32>, vector<32x128xf32>, vector<2x128xf32> -> vector<2x128xf32>
    %244 = arith.addf %242, %243 : vector<2x128xf32>
    %245 = arith.addi %12, %c4_i32 : i32
    %246 = vector.broadcast %245 : i32 to vector<2x1xi32>
    %247 = arith.cmpi slt, %246, %11 : vector<2x1xi32>
    %248 = arith.extui %247 : vector<2x1xi1> to vector<2x1xi32>
    %249 = arith.sitofp %248 : vector<2x1xi32> to vector<2x1xf32>
    %250 = vector.extract_strided_slice %244 {offsets = [0, 0], sizes = [2, 32], strides = [1, 1]} : vector<2x128xf32> to vector<2x32xf32>
    %251 = arith.negf %250 : vector<2x32xf32>
    %252 = math.exp %251 : vector<2x32xf32>
    %cst_60 = arith.constant 1.000000e+00 : f32
    %253 = vector.broadcast %cst_60 : f32 to vector<2x32xf32>
    %254 = arith.addf %253, %252 : vector<2x32xf32>
    %255 = arith.divf %253, %254 : vector<2x32xf32>
    %256 = vector.extract_strided_slice %244 {offsets = [0, 32], sizes = [2, 32], strides = [1, 1]} : vector<2x128xf32> to vector<2x32xf32>
    %257 = arith.negf %256 : vector<2x32xf32>
    %258 = math.exp %257 : vector<2x32xf32>
    %cst_61 = arith.constant 1.000000e+00 : f32
    %259 = vector.broadcast %cst_61 : f32 to vector<2x32xf32>
    %260 = arith.addf %259, %258 : vector<2x32xf32>
    %261 = arith.divf %259, %260 : vector<2x32xf32>
    %262 = vector.extract_strided_slice %244 {offsets = [0, 64], sizes = [2, 32], strides = [1, 1]} : vector<2x128xf32> to vector<2x32xf32>
    %263 = math.tanh %262 : vector<2x32xf32>
    %264 = vector.extract_strided_slice %244 {offsets = [0, 96], sizes = [2, 32], strides = [1, 1]} : vector<2x128xf32> to vector<2x32xf32>
    %265 = arith.negf %264 : vector<2x32xf32>
    %266 = math.exp %265 : vector<2x32xf32>
    %cst_62 = arith.constant 1.000000e+00 : f32
    %267 = vector.broadcast %cst_62 : f32 to vector<2x32xf32>
    %268 = arith.addf %267, %266 : vector<2x32xf32>
    %269 = arith.divf %267, %268 : vector<2x32xf32>
    %270 = arith.mulf %261, %238 : vector<2x32xf32>
    %271 = arith.mulf %255, %263 : vector<2x32xf32>
    %272 = arith.addf %270, %271 : vector<2x32xf32>
    %273 = math.tanh %272 : vector<2x32xf32>
    %274 = arith.mulf %269, %273 : vector<2x32xf32>
    %275 = vector.broadcast %249 : vector<2x1xf32> to vector<2x32xf32>
    %276 = arith.mulf %275, %274 : vector<2x32xf32>
    %277 = arith.index_cast %c4_i32 : i32 to index
    %c0_63 = arith.constant 0 : index
    %c0_64 = arith.constant 0 : index
    %278 = vector.load %arg8[%277, %c0_63, %c0_64] : memref<8x2x32xf32, #tpu.memory_space<vmem>>, vector<1x2x32xf32>
    %279 = vector.shape_cast %278 : vector<1x2x32xf32> to vector<2x32xf32>
    %280 = vector.shape_cast %276 : vector<2x32xf32> to vector<1x2x32xf32>
    tpu.vector_store %arg8[%277, %c0_63, %c0_64], %280 {strides = array<i32>} : memref<8x2x32xf32, #tpu.memory_space<vmem>>, vector<1x2x32xf32>,
    %281 = vector.broadcast %249 : vector<2x1xf32> to vector<2x32xf32>
    %282 = arith.mulf %281, %274 : vector<2x32xf32>
    %cst_65 = arith.constant 1.000000e+00 : f32
    %283 = vector.broadcast %cst_65 : f32 to vector<2x1xf32>
    %284 = arith.subf %283, %249 : vector<2x1xf32>
    %285 = vector.broadcast %284 : vector<2x1xf32> to vector<2x32xf32>
    %286 = arith.mulf %285, %231 : vector<2x32xf32>
    %287 = arith.addf %282, %286 : vector<2x32xf32>
    %288 = vector.broadcast %249 : vector<2x1xf32> to vector<2x32xf32>
    %289 = arith.mulf %288, %272 : vector<2x32xf32>
    %cst_66 = arith.constant 1.000000e+00 : f32
    %290 = vector.broadcast %cst_66 : f32 to vector<2x1xf32>
    %291 = arith.subf %290, %249 : vector<2x1xf32>
    %292 = vector.broadcast %291 : vector<2x1xf32> to vector<2x32xf32>
    %293 = arith.mulf %292, %238 : vector<2x32xf32>
    %294 = arith.addf %289, %293 : vector<2x32xf32>
    %c5_i32 = arith.constant 5 : i32
    %c2_i32_67 = arith.constant 2 : i32
    %295 = arith.muli %c5_i32, %c2_i32_67 : i32
    %296 = tpu.assume_multiple %295, 2 : i32
    %297 = arith.index_cast %296 : i32 to index
    %c0_68 = arith.constant 0 : index
    %298 = vector.load %arg11[%297, %c0_68] : memref<16x128xf32, #tpu.memory_space<vmem>>, vector<2x128xf32>
    %cst_69 = arith.constant dense<0.000000e+00> : vector<2x128xf32>
    %299 = tpu.matmul %287, %10, %cst_69 {dimension_numbers = #tpu.dot_dimension_numbers<[1], [0], [0], [1], [0, 0, 1, 1], [], []>} : vector<2x32xf32>, vector<32x128xf32>, vector<2x128xf32> -> vector<2x128xf32>
    %300 = arith.addf %298, %299 : vector<2x128xf32>
    %301 = arith.addi %12, %c5_i32 : i32
    %302 = vector.broadcast %301 : i32 to vector<2x1xi32>
    %303 = arith.cmpi slt, %302, %11 : vector<2x1xi32>
    %304 = arith.extui %303 : vector<2x1xi1> to vector<2x1xi32>
    %305 = arith.sitofp %304 : vector<2x1xi32> to vector<2x1xf32>
    %306 = vector.extract_strided_slice %300 {offsets = [0, 0], sizes = [2, 32], strides = [1, 1]} : vector<2x128xf32> to vector<2x32xf32>
    %307 = arith.negf %306 : vector<2x32xf32>
    %308 = math.exp %307 : vector<2x32xf32>
    %cst_70 = arith.constant 1.000000e+00 : f32
    %309 = vector.broadcast %cst_70 : f32 to vector<2x32xf32>
    %310 = arith.addf %309, %308 : vector<2x32xf32>
    %311 = arith.divf %309, %310 : vector<2x32xf32>
    %312 = vector.extract_strided_slice %300 {offsets = [0, 32], sizes = [2, 32], strides = [1, 1]} : vector<2x128xf32> to vector<2x32xf32>
    %313 = arith.negf %312 : vector<2x32xf32>
    %314 = math.exp %313 : vector<2x32xf32>
    %cst_71 = arith.constant 1.000000e+00 : f32
    %315 = vector.broadcast %cst_71 : f32 to vector<2x32xf32>
    %316 = arith.addf %315, %314 : vector<2x32xf32>
    %317 = arith.divf %315, %316 : vector<2x32xf32>
    %318 = vector.extract_strided_slice %300 {offsets = [0, 64], sizes = [2, 32], strides = [1, 1]} : vector<2x128xf32> to vector<2x32xf32>
    %319 = math.tanh %318 : vector<2x32xf32>
    %320 = vector.extract_strided_slice %300 {offsets = [0, 96], sizes = [2, 32], strides = [1, 1]} : vector<2x128xf32> to vector<2x32xf32>
    %321 = arith.negf %320 : vector<2x32xf32>
    %322 = math.exp %321 : vector<2x32xf32>
    %cst_72 = arith.constant 1.000000e+00 : f32
    %323 = vector.broadcast %cst_72 : f32 to vector<2x32xf32>
    %324 = arith.addf %323, %322 : vector<2x32xf32>
    %325 = arith.divf %323, %324 : vector<2x32xf32>
    %326 = arith.mulf %317, %294 : vector<2x32xf32>
    %327 = arith.mulf %311, %319 : vector<2x32xf32>
    %328 = arith.addf %326, %327 : vector<2x32xf32>
    %329 = math.tanh %328 : vector<2x32xf32>
    %330 = arith.mulf %325, %329 : vector<2x32xf32>
    %331 = vector.broadcast %305 : vector<2x1xf32> to vector<2x32xf32>
    %332 = arith.mulf %331, %330 : vector<2x32xf32>
    %333 = arith.index_cast %c5_i32 : i32 to index
    %c0_73 = arith.constant 0 : index
    %c0_74 = arith.constant 0 : index
    %334 = vector.load %arg8[%333, %c0_73, %c0_74] : memref<8x2x32xf32, #tpu.memory_space<vmem>>, vector<1x2x32xf32>
    %335 = vector.shape_cast %334 : vector<1x2x32xf32> to vector<2x32xf32>
    %336 = vector.shape_cast %332 : vector<2x32xf32> to vector<1x2x32xf32>
    tpu.vector_store %arg8[%333, %c0_73, %c0_74], %336 {strides = array<i32>} : memref<8x2x32xf32, #tpu.memory_space<vmem>>, vector<1x2x32xf32>,
    %337 = vector.broadcast %305 : vector<2x1xf32> to vector<2x32xf32>
    %338 = arith.mulf %337, %330 : vector<2x32xf32>
    %cst_75 = arith.constant 1.000000e+00 : f32
    %339 = vector.broadcast %cst_75 : f32 to vector<2x1xf32>
    %340 = arith.subf %339, %305 : vector<2x1xf32>
    %341 = vector.broadcast %340 : vector<2x1xf32> to vector<2x32xf32>
    %342 = arith.mulf %341, %287 : vector<2x32xf32>
    %343 = arith.addf %338, %342 : vector<2x32xf32>
    %344 = vector.broadcast %305 : vector<2x1xf32> to vector<2x32xf32>
    %345 = arith.mulf %344, %328 : vector<2x32xf32>
    %cst_76 = arith.constant 1.000000e+00 : f32
    %346 = vector.broadcast %cst_76 : f32 to vector<2x1xf32>
    %347 = arith.subf %346, %305 : vector<2x1xf32>
    %348 = vector.broadcast %347 : vector<2x1xf32> to vector<2x32xf32>
    %349 = arith.mulf %348, %294 : vector<2x32xf32>
    %350 = arith.addf %345, %349 : vector<2x32xf32>
    %c6_i32 = arith.constant 6 : i32
    %c2_i32_77 = arith.constant 2 : i32
    %351 = arith.muli %c6_i32, %c2_i32_77 : i32
    %352 = tpu.assume_multiple %351, 2 : i32
    %353 = arith.index_cast %352 : i32 to index
    %c0_78 = arith.constant 0 : index
    %354 = vector.load %arg11[%353, %c0_78] : memref<16x128xf32, #tpu.memory_space<vmem>>, vector<2x128xf32>
    %cst_79 = arith.constant dense<0.000000e+00> : vector<2x128xf32>
    %355 = tpu.matmul %343, %10, %cst_79 {dimension_numbers = #tpu.dot_dimension_numbers<[1], [0], [0], [1], [0, 0, 1, 1], [], []>} : vector<2x32xf32>, vector<32x128xf32>, vector<2x128xf32> -> vector<2x128xf32>
    %356 = arith.addf %354, %355 : vector<2x128xf32>
    %357 = arith.addi %12, %c6_i32 : i32
    %358 = vector.broadcast %357 : i32 to vector<2x1xi32>
    %359 = arith.cmpi slt, %358, %11 : vector<2x1xi32>
    %360 = arith.extui %359 : vector<2x1xi1> to vector<2x1xi32>
    %361 = arith.sitofp %360 : vector<2x1xi32> to vector<2x1xf32>
    %362 = vector.extract_strided_slice %356 {offsets = [0, 0], sizes = [2, 32], strides = [1, 1]} : vector<2x128xf32> to vector<2x32xf32>
    %363 = arith.negf %362 : vector<2x32xf32>
    %364 = math.exp %363 : vector<2x32xf32>
    %cst_80 = arith.constant 1.000000e+00 : f32
    %365 = vector.broadcast %cst_80 : f32 to vector<2x32xf32>
    %366 = arith.addf %365, %364 : vector<2x32xf32>
    %367 = arith.divf %365, %366 : vector<2x32xf32>
    %368 = vector.extract_strided_slice %356 {offsets = [0, 32], sizes = [2, 32], strides = [1, 1]} : vector<2x128xf32> to vector<2x32xf32>
    %369 = arith.negf %368 : vector<2x32xf32>
    %370 = math.exp %369 : vector<2x32xf32>
    %cst_81 = arith.constant 1.000000e+00 : f32
    %371 = vector.broadcast %cst_81 : f32 to vector<2x32xf32>
    %372 = arith.addf %371, %370 : vector<2x32xf32>
    %373 = arith.divf %371, %372 : vector<2x32xf32>
    %374 = vector.extract_strided_slice %356 {offsets = [0, 64], sizes = [2, 32], strides = [1, 1]} : vector<2x128xf32> to vector<2x32xf32>
    %375 = math.tanh %374 : vector<2x32xf32>
    %376 = vector.extract_strided_slice %356 {offsets = [0, 96], sizes = [2, 32], strides = [1, 1]} : vector<2x128xf32> to vector<2x32xf32>
    %377 = arith.negf %376 : vector<2x32xf32>
    %378 = math.exp %377 : vector<2x32xf32>
    %cst_82 = arith.constant 1.000000e+00 : f32
    %379 = vector.broadcast %cst_82 : f32 to vector<2x32xf32>
    %380 = arith.addf %379, %378 : vector<2x32xf32>
    %381 = arith.divf %379, %380 : vector<2x32xf32>
    %382 = arith.mulf %373, %350 : vector<2x32xf32>
    %383 = arith.mulf %367, %375 : vector<2x32xf32>
    %384 = arith.addf %382, %383 : vector<2x32xf32>
    %385 = math.tanh %384 : vector<2x32xf32>
    %386 = arith.mulf %381, %385 : vector<2x32xf32>
    %387 = vector.broadcast %361 : vector<2x1xf32> to vector<2x32xf32>
    %388 = arith.mulf %387, %386 : vector<2x32xf32>
    %389 = arith.index_cast %c6_i32 : i32 to index
    %c0_83 = arith.constant 0 : index
    %c0_84 = arith.constant 0 : index
    %390 = vector.load %arg8[%389, %c0_83, %c0_84] : memref<8x2x32xf32, #tpu.memory_space<vmem>>, vector<1x2x32xf32>
    %391 = vector.shape_cast %390 : vector<1x2x32xf32> to vector<2x32xf32>
    %392 = vector.shape_cast %388 : vector<2x32xf32> to vector<1x2x32xf32>
    tpu.vector_store %arg8[%389, %c0_83, %c0_84], %392 {strides = array<i32>} : memref<8x2x32xf32, #tpu.memory_space<vmem>>, vector<1x2x32xf32>,
    %393 = vector.broadcast %361 : vector<2x1xf32> to vector<2x32xf32>
    %394 = arith.mulf %393, %386 : vector<2x32xf32>
    %cst_85 = arith.constant 1.000000e+00 : f32
    %395 = vector.broadcast %cst_85 : f32 to vector<2x1xf32>
    %396 = arith.subf %395, %361 : vector<2x1xf32>
    %397 = vector.broadcast %396 : vector<2x1xf32> to vector<2x32xf32>
    %398 = arith.mulf %397, %343 : vector<2x32xf32>
    %399 = arith.addf %394, %398 : vector<2x32xf32>
    %400 = vector.broadcast %361 : vector<2x1xf32> to vector<2x32xf32>
    %401 = arith.mulf %400, %384 : vector<2x32xf32>
    %cst_86 = arith.constant 1.000000e+00 : f32
    %402 = vector.broadcast %cst_86 : f32 to vector<2x1xf32>
    %403 = arith.subf %402, %361 : vector<2x1xf32>
    %404 = vector.broadcast %403 : vector<2x1xf32> to vector<2x32xf32>
    %405 = arith.mulf %404, %350 : vector<2x32xf32>
    %406 = arith.addf %401, %405 : vector<2x32xf32>
    %c7_i32 = arith.constant 7 : i32
    %c2_i32_87 = arith.constant 2 : i32
    %407 = arith.muli %c7_i32, %c2_i32_87 : i32
    %408 = tpu.assume_multiple %407, 2 : i32
    %409 = arith.index_cast %408 : i32 to index
    %c0_88 = arith.constant 0 : index
    %410 = vector.load %arg11[%409, %c0_88] : memref<16x128xf32, #tpu.memory_space<vmem>>, vector<2x128xf32>
    %cst_89 = arith.constant dense<0.000000e+00> : vector<2x128xf32>
    %411 = tpu.matmul %399, %10, %cst_89 {dimension_numbers = #tpu.dot_dimension_numbers<[1], [0], [0], [1], [0, 0, 1, 1], [], []>} : vector<2x32xf32>, vector<32x128xf32>, vector<2x128xf32> -> vector<2x128xf32>
    %412 = arith.addf %410, %411 : vector<2x128xf32>
    %413 = arith.addi %12, %c7_i32 : i32
    %414 = vector.broadcast %413 : i32 to vector<2x1xi32>
    %415 = arith.cmpi slt, %414, %11 : vector<2x1xi32>
    %416 = arith.extui %415 : vector<2x1xi1> to vector<2x1xi32>
    %417 = arith.sitofp %416 : vector<2x1xi32> to vector<2x1xf32>
    %418 = vector.extract_strided_slice %412 {offsets = [0, 0], sizes = [2, 32], strides = [1, 1]} : vector<2x128xf32> to vector<2x32xf32>
    %419 = arith.negf %418 : vector<2x32xf32>
    %420 = math.exp %419 : vector<2x32xf32>
    %cst_90 = arith.constant 1.000000e+00 : f32
    %421 = vector.broadcast %cst_90 : f32 to vector<2x32xf32>
    %422 = arith.addf %421, %420 : vector<2x32xf32>
    %423 = arith.divf %421, %422 : vector<2x32xf32>
    %424 = vector.extract_strided_slice %412 {offsets = [0, 32], sizes = [2, 32], strides = [1, 1]} : vector<2x128xf32> to vector<2x32xf32>
    %425 = arith.negf %424 : vector<2x32xf32>
    %426 = math.exp %425 : vector<2x32xf32>
    %cst_91 = arith.constant 1.000000e+00 : f32
    %427 = vector.broadcast %cst_91 : f32 to vector<2x32xf32>
    %428 = arith.addf %427, %426 : vector<2x32xf32>
    %429 = arith.divf %427, %428 : vector<2x32xf32>
    %430 = vector.extract_strided_slice %412 {offsets = [0, 64], sizes = [2, 32], strides = [1, 1]} : vector<2x128xf32> to vector<2x32xf32>
    %431 = math.tanh %430 : vector<2x32xf32>
    %432 = vector.extract_strided_slice %412 {offsets = [0, 96], sizes = [2, 32], strides = [1, 1]} : vector<2x128xf32> to vector<2x32xf32>
    %433 = arith.negf %432 : vector<2x32xf32>
    %434 = math.exp %433 : vector<2x32xf32>
    %cst_92 = arith.constant 1.000000e+00 : f32
    %435 = vector.broadcast %cst_92 : f32 to vector<2x32xf32>
    %436 = arith.addf %435, %434 : vector<2x32xf32>
    %437 = arith.divf %435, %436 : vector<2x32xf32>
    %438 = arith.mulf %429, %406 : vector<2x32xf32>
    %439 = arith.mulf %423, %431 : vector<2x32xf32>
    %440 = arith.addf %438, %439 : vector<2x32xf32>
    %441 = math.tanh %440 : vector<2x32xf32>
    %442 = arith.mulf %437, %441 : vector<2x32xf32>
    %443 = vector.broadcast %417 : vector<2x1xf32> to vector<2x32xf32>
    %444 = arith.mulf %443, %442 : vector<2x32xf32>
    %445 = arith.index_cast %c7_i32 : i32 to index
    %c0_93 = arith.constant 0 : index
    %c0_94 = arith.constant 0 : index
    %446 = vector.load %arg8[%445, %c0_93, %c0_94] : memref<8x2x32xf32, #tpu.memory_space<vmem>>, vector<1x2x32xf32>
    %447 = vector.shape_cast %446 : vector<1x2x32xf32> to vector<2x32xf32>
    %448 = vector.shape_cast %444 : vector<2x32xf32> to vector<1x2x32xf32>
    tpu.vector_store %arg8[%445, %c0_93, %c0_94], %448 {strides = array<i32>} : memref<8x2x32xf32, #tpu.memory_space<vmem>>, vector<1x2x32xf32>,
    %449 = vector.broadcast %417 : vector<2x1xf32> to vector<2x32xf32>
    %450 = arith.mulf %449, %442 : vector<2x32xf32>
    %cst_95 = arith.constant 1.000000e+00 : f32
    %451 = vector.broadcast %cst_95 : f32 to vector<2x1xf32>
    %452 = arith.subf %451, %417 : vector<2x1xf32>
    %453 = vector.broadcast %452 : vector<2x1xf32> to vector<2x32xf32>
    %454 = arith.mulf %453, %399 : vector<2x32xf32>
    %455 = arith.addf %450, %454 : vector<2x32xf32>
    %456 = vector.broadcast %417 : vector<2x1xf32> to vector<2x32xf32>
    %457 = arith.mulf %456, %440 : vector<2x32xf32>
    %cst_96 = arith.constant 1.000000e+00 : f32
    %458 = vector.broadcast %cst_96 : f32 to vector<2x1xf32>
    %459 = arith.subf %458, %417 : vector<2x1xf32>
    %460 = vector.broadcast %459 : vector<2x1xf32> to vector<2x32xf32>
    %461 = arith.mulf %460, %406 : vector<2x32xf32>
    %462 = arith.addf %457, %461 : vector<2x32xf32>
    %c8_i32_97 = arith.constant 8 : i32
    %c0_98 = arith.constant 0 : index
    %c0_99 = arith.constant 0 : index
    %463 = vector.load %arg12[%c0_98, %c0_99] : memref<2x32xf32, #tpu.memory_space<vmem>>, vector<2x32xf32>
    tpu.vector_store %arg12[%c0_98, %c0_99], %455 {strides = array<i32>} : memref<2x32xf32, #tpu.memory_space<vmem>>, vector<2x32xf32>,
    %c0_100 = arith.constant 0 : index
    %c0_101 = arith.constant 0 : index
    %464 = vector.load %arg13[%c0_100, %c0_101] : memref<2x32xf32, #tpu.memory_space<vmem>>, vector<2x32xf32>
    tpu.vector_store %arg13[%c0_100, %c0_101], %462 {strides = array<i32>} : memref<2x32xf32, #tpu.memory_space<vmem>>, vector<2x32xf32>,
    %c1_i32_102 = arith.constant 1 : i32
    %465 = arith.cmpi eq, %arg0, %c1_i32_102 : i32
    %466 = arith.extui %465 : i1 to i32
    %c0_i32_103 = arith.constant 0 : i32
    %467 = arith.cmpi ne, %466, %c0_i32_103 : i32
    scf.if %467 {
      %c0_104 = arith.constant 0 : index
      %c0_105 = arith.constant 0 : index
      %468 = vector.load %arg12[%c0_104, %c0_105] : memref<2x32xf32, #tpu.memory_space<vmem>>, vector<2x32xf32>
      %c0_106 = arith.constant 0 : index
      %c0_107 = arith.constant 0 : index
      %469 = vector.load %arg9[%c0_106, %c0_107] : memref<2x32xf32, #tpu.memory_space<vmem>>, vector<2x32xf32>
      tpu.vector_store %arg9[%c0_106, %c0_107], %468 {strides = array<i32>} : memref<2x32xf32, #tpu.memory_space<vmem>>, vector<2x32xf32>,
      %c0_108 = arith.constant 0 : index
      %c0_109 = arith.constant 0 : index
      %470 = vector.load %arg13[%c0_108, %c0_109] : memref<2x32xf32, #tpu.memory_space<vmem>>, vector<2x32xf32>
      %c0_110 = arith.constant 0 : index
      %c0_111 = arith.constant 0 : index
      %471 = vector.load %arg10[%c0_110, %c0_111] : memref<2x32xf32, #tpu.memory_space<vmem>>, vector<2x32xf32>
      tpu.vector_store %arg10[%c0_110, %c0_111], %470 {strides = array<i32>} : memref<2x32xf32, #tpu.memory_space<vmem>>, vector<2x32xf32>,
    } else {
    }
    return
  }
  func.func @transform_0(%arg0: i32) -> (i32, i32) {
    %c0_i32 = arith.constant 0 : i32
    %c0_i32_0 = arith.constant 0 : i32
    %c0_i32_1 = arith.constant 0 : i32
    return %c0_i32, %c0_i32_0 : i32, i32
  }
  func.func @transform_1(%arg0: i32) -> (i32, i32) {
    %c0_i32 = arith.constant 0 : i32
    %c0_i32_0 = arith.constant 0 : i32
    return %arg0, %c0_i32 : i32, i32
  }
  func.func @transform_2(%arg0: i32) -> (i32, i32) {
    %c0_i32 = arith.constant 0 : i32
    %c0_i32_0 = arith.constant 0 : i32
    %c0_i32_1 = arith.constant 0 : i32
    return %c0_i32, %c0_i32_0 : i32, i32
  }
  func.func @transform_3(%arg0: i32) -> (i32, i32) {
    %c0_i32 = arith.constant 0 : i32
    %c0_i32_0 = arith.constant 0 : i32
    %c0_i32_1 = arith.constant 0 : i32
    return %c0_i32, %c0_i32_0 : i32, i32
  }
  func.func @transform_4(%arg0: i32) -> (i32, i32) {
    %c0_i32 = arith.constant 0 : i32
    %c0_i32_0 = arith.constant 0 : i32
    %c0_i32_1 = arith.constant 0 : i32
    return %c0_i32, %c0_i32_0 : i32, i32
  }
  func.func @transform_5(%arg0: i32) -> (i32, i32) {
    %c0_i32 = arith.constant 0 : i32
    %c0_i32_0 = arith.constant 0 : i32
    %c0_i32_1 = arith.constant 0 : i32
    return %c0_i32, %c0_i32_0 : i32, i32
  }
  func.func @transform_6(%arg0: i32) -> (i32, i32) {
    %c0_i32 = arith.constant 0 : i32
    %c0_i32_0 = arith.constant 0 : i32
    %c0_i32_1 = arith.constant 0 : i32
    return %c0_i32, %c0_i32_0 : i32, i32
  }
  func.func @transform_7(%arg0: i32) -> (i32, i32, i32) {
    %c0_i32 = arith.constant 0 : i32
    %c0_i32_0 = arith.constant 0 : i32
    %c0_i32_1 = arith.constant 0 : i32
    return %arg0, %c0_i32, %c0_i32_0 : i32, i32, i32
  }
  func.func @transform_8(%arg0: i32) -> (i32, i32) {
    %c0_i32 = arith.constant 0 : i32
    %c0_i32_0 = arith.constant 0 : i32
    %c0_i32_1 = arith.constant 0 : i32
    return %c0_i32, %c0_i32_0 : i32, i32
  }
  func.func @transform_9(%arg0: i32) -> (i32, i32) {
    %c0_i32 = arith.constant 0 : i32
    %c0_i32_0 = arith.constant 0 : i32
    %c0_i32_1 = arith.constant 0 : i32
    return %c0_i32, %c0_i32_0 : i32, i32
  }
}

</mosaic_0001>

<llo_original>
// kernel: tpu_custom_call.1
$region0: #{tpu_custom_call.1}
  #allocation0 [shape = 'u32[]', space=smem, size = 0x4, offset = 0x4, fixed_abs, tag = 'smem constant byte address 0x4 - core index']
  #allocation1 [shape = 'u32[72,128]{1,0:T(1,128)}', space=vmem, size = 0x9000, scoped, tag = 'internal scratch']
  #allocation2 [shape = 'f32[16,128]{1,0:T(8,128)}', space=vmem, size = 0x2000, scoped, tag = 'scratch operand']
  #allocation3 [shape = 'f32[2,32]{1,0:T(2,128)}', space=vmem, size = 0x400, scoped, tag = 'scratch operand']
  #allocation4 [shape = 'f32[2,32]{1,0:T(2,128)}', space=vmem, size = 0x400, scoped, tag = 'scratch operand']
  %s0 = inlined_call_operand.vmem [shape: s32[2,1], index: 0, kind: input, shape index: {}]
  %s1 = inlined_call_operand.vmem [shape: f32[32,24], index: 1, kind: input, shape index: {}]
  %s2 = inlined_call_operand.vmem [shape: f32[24,128], index: 2, kind: input, shape index: {}]
  %s3 = inlined_call_operand.vmem [shape: f32[32,128], index: 3, kind: input, shape index: {}]
  %s4 = inlined_call_operand.vmem [shape: f32[1,128], index: 4, kind: input, shape index: {}]
  %s5 = inlined_call_operand.vmem [shape: f32[2,32], index: 5, kind: input, shape index: {}]
  %s6 = inlined_call_operand.vmem [shape: f32[2,32], index: 6, kind: input, shape index: {}]
  %s7 = inlined_call_operand.hbm [shape: f32[16,2,32], index: 7, kind: output, shape index: {0}]
  %s8 = inlined_call_operand.hbm [shape: f32[2,32], index: 8, kind: output, shape index: {1}]
  %s9 = inlined_call_operand.hbm [shape: f32[2,32], index: 9, kind: output, shape index: {2}]
  %10 = xla_tuple %s7, %s8, %s9
  %s11 = sld [smem:[#allocation0]]
  $region85: #{tpu_custom_call.1} parent=0
    _
  %s13 = ssub.s32 1, %s11
  %s14 = scalar_select 0, %s13, %s11
  $region1: #{tpu_custom_call.1} parent=0
    #allocation5 [shape = 'u8[16384]{0}', space=vmem, size = 0x4000, scoped, tag = 'output window, operand 0']
    #allocation6 [shape = 's32[2]{0}', space=sflag, size = 0x8, scoped, tag = 'scoped memory for tpu_custom_call.1']
    #allocation7 [shape = 'u8[1024]{0}', space=vmem, size = 0x400, scoped, tag = 'output window, operand 1, single buffered']
    #allocation8 [shape = 's32[1]{0}', space=sflag, size = 0x4, scoped, tag = 'scoped memory for tpu_custom_call.1']
    #allocation9 [shape = 'u8[1024]{0}', space=vmem, size = 0x400, scoped, tag = 'output window, operand 2, single buffered']
    %15 = vsyncpa [#allocation6], 0
    %s16 = scalar_lea.sflag [#allocation6], 1
    %17 = vsyncpa %s16, 0
    %18 = vsyncpa [#allocation8], 0
    loop: start=0, step=1, limit=4
    $region2: #{tpu_custom_call.1} parent=1 // loop_pre_header
      _
    $region3: #{tpu_custom_call.1} parent=1 // loop_header
      %s20 = sphi 0, %s24
      %p21 = scmp.ge.s32.totalorder %s20, 4
      %s28 = sphi 0, %s28
      %s30 = sphi 0, %s28
      %s31 = sphi 0, %s30
      %s45 = sphi 0, %s31
      %s51 = sphi 0, %s53
      %s54 = sphi 0, %s51
      %s55 = sphi 0, %s54
      %s71 = sphi 0, %s55
      %s75 = sphi 0, %s75
      %s77 = sphi 0, %s75
      %s78 = sphi 0, %s77
      %s92 = sphi 0, %s78
      %s96 = sphi 0, %s96
      %s98 = sphi 0, %s96
      %s99 = sphi 0, %s98
      %s113 = sphi 0, %s99
      %s117 = sphi 0, %s117
      %s119 = sphi 0, %s117
      %s120 = sphi 0, %s119
      %s134 = sphi 0, %s120
      %s138 = sphi 0, %s138
      %s140 = sphi 0, %s138
      %s141 = sphi 0, %s140
      %s155 = sphi 0, %s141
      %s159 = sphi 0, %s159
      %s161 = sphi 0, %s159
      %s162 = sphi 0, %s161
      %s176 = sphi 0, %s162
      %s182 = sphi 0, %s184
      %s185 = sphi 0, %s182
      %s186 = sphi 0, %s185
      %s202 = sphi 0, %s186
      %s206 = sphi 0, %s206
      %s208 = sphi 0, %s206
      %s209 = sphi 0, %s208
      %s223 = sphi 0, %s209
      %s227 = sphi 0, %s227
      %s229 = sphi 0, %s227
      %s230 = sphi 0, %s229
      %s244 = sphi 0, %s230
    $region4: #{tpu_custom_call.1} parent=1 // loop_header_branch
      %23 = sbr.rel (%p21) target = $region8
    $region5: #{tpu_custom_call.1} parent=1 // loop_body
      %s25 = ssub.s32 %s20, 1
      %s26 = ssub.s32 %s20, 2
      %s27 = sadd.s32 %s20, 1
      %s29 = sadd.s32 %s28, 1
      %p32 = scmp.eq.s32.totalorder %s20, 1
      %p33 = scmp.ne.s32.totalorder %s28, %s30
      %p34 = scmp.eq.s32.totalorder %s20, 0
      %p35 = por %p33, %p34
      %p36 = scmp.ne.s32.totalorder %s28, %s30
      %p37 = scmp.eq.s32.totalorder %s25, 1
      %p38 = por %p36, %p37
      %p39 = scmp.ne.s32.totalorder %s30, %s31
      %p40 = scmp.eq.s32.totalorder %s25, 0
      %p41 = por %p39, %p40
      %p42 = scmp.ne.s32.totalorder %s30, %s31
      %p43 = scmp.eq.s32.totalorder %s26, 1
      %p44 = por %p42, %p43
      %p46 = scmp.ne.s32.totalorder %s31, %s45
      %p47 = scmp.eq.s32.totalorder %s26, 0
      %p48 = por %p46, %p47
      %s49 = ssub.s32 %s20, %s27
      %p50 = scmp.eq.s32.totalorder %s49, 0
      %s52 = sadd.s32 %s51, 1
      %s53 = scalar_select %p50, %s51, %s52
      %p56 = pneg %p50
      %p57 = scmp.eq.s32.totalorder %s20, 1
      %p58 = por %p56, %p57
      %p59 = scmp.ne.s32.totalorder %s51, %s54
      %p60 = scmp.eq.s32.totalorder %s20, 0
      %p61 = por %p59, %p60
      %p62 = scmp.ne.s32.totalorder %s51, %s54
      %p63 = scmp.eq.s32.totalorder %s25, 1
      %p64 = por %p62, %p63
      %p65 = scmp.ne.s32.totalorder %s54, %s55
      %p66 = scmp.eq.s32.totalorder %s25, 0
      %p67 = por %p65, %p66
      %p68 = scmp.ne.s32.totalorder %s54, %s55
      %p69 = scmp.eq.s32.totalorder %s26, 1
      %p70 = por %p68, %p69
      %p72 = scmp.ne.s32.totalorder %s55, %s71
      %p73 = scmp.eq.s32.totalorder %s26, 0
      %p74 = por %p72, %p73
      %s76 = sadd.s32 %s75, 1
      %p79 = scmp.eq.s32.totalorder %s20, 1
      %p80 = scmp.ne.s32.totalorder %s75, %s77
      %p81 = scmp.eq.s32.totalorder %s20, 0
      %p82 = por %p80, %p81
      %p83 = scmp.ne.s32.totalorder %s75, %s77
      %p84 = scmp.eq.s32.totalorder %s25, 1
      %p85 = por %p83, %p84
      %p86 = scmp.ne.s32.totalorder %s77, %s78
      %p87 = scmp.eq.s32.totalorder %s25, 0
      %p88 = por %p86, %p87
      %p89 = scmp.ne.s32.totalorder %s77, %s78
      %p90 = scmp.eq.s32.totalorder %s26, 1
      %p91 = por %p89, %p90
      %p93 = scmp.ne.s32.totalorder %s78, %s92
      %p94 = scmp.eq.s32.totalorder %s26, 0
      %p95 = por %p93, %p94
      %s97 = sadd.s32 %s96, 1
      %p100 = scmp.eq.s32.totalorder %s20, 1
      %p101 = scmp.ne.s32.totalorder %s96, %s98
      %p102 = scmp.eq.s32.totalorder %s20, 0
      %p103 = por %p101, %p102
      %p104 = scmp.ne.s32.totalorder %s96, %s98
      %p105 = scmp.eq.s32.totalorder %s25, 1
      %p106 = por %p104, %p105
      %p107 = scmp.ne.s32.totalorder %s98, %s99
      %p108 = scmp.eq.s32.totalorder %s25, 0
      %p109 = por %p107, %p108
      %p110 = scmp.ne.s32.totalorder %s98, %s99
      %p111 = scmp.eq.s32.totalorder %s26, 1
      %p112 = por %p110, %p111
      %p114 = scmp.ne.s32.totalorder %s99, %s113
      %p115 = scmp.eq.s32.totalorder %s26, 0
      %p116 = por %p114, %p115
      %s118 = sadd.s32 %s117, 1
      %p121 = scmp.eq.s32.totalorder %s20, 1
      %p122 = scmp.ne.s32.totalorder %s117, %s119
      %p123 = scmp.eq.s32.totalorder %s20, 0
      %p124 = por %p122, %p123
      %p125 = scmp.ne.s32.totalorder %s117, %s119
      %p126 = scmp.eq.s32.totalorder %s25, 1
      %p127 = por %p125, %p126
      %p128 = scmp.ne.s32.totalorder %s119, %s120
      %p129 = scmp.eq.s32.totalorder %s25, 0
      %p130 = por %p128, %p129
      %p131 = scmp.ne.s32.totalorder %s119, %s120
      %p132 = scmp.eq.s32.totalorder %s26, 1
      %p133 = por %p131, %p132
      %p135 = scmp.ne.s32.totalorder %s120, %s134
      %p136 = scmp.eq.s32.totalorder %s26, 0
      %p137 = por %p135, %p136
      %s139 = sadd.s32 %s138, 1
      %p142 = scmp.eq.s32.totalorder %s20, 1
      %p143 = scmp.ne.s32.totalorder %s138, %s140
      %p144 = scmp.eq.s32.totalorder %s20, 0
      %p145 = por %p143, %p144
      %p146 = scmp.ne.s32.totalorder %s138, %s140
      %p147 = scmp.eq.s32.totalorder %s25, 1
      %p148 = por %p146, %p147
      %p149 = scmp.ne.s32.totalorder %s140, %s141
      %p150 = scmp.eq.s32.totalorder %s25, 0
      %p151 = por %p149, %p150
      %p152 = scmp.ne.s32.totalorder %s140, %s141
      %p153 = scmp.eq.s32.totalorder %s26, 1
      %p154 = por %p152, %p153
      %p156 = scmp.ne.s32.totalorder %s141, %s155
      %p157 = scmp.eq.s32.totalorder %s26, 0
      %p158 = por %p156, %p157
      %s160 = sadd.s32 %s159, 1
      %p163 = scmp.eq.s32.totalorder %s20, 1
      %p164 = scmp.ne.s32.totalorder %s159, %s161
      %p165 = scmp.eq.s32.totalorder %s20, 0
      %p166 = por %p164, %p165
      %p167 = scmp.ne.s32.totalorder %s159, %s161
      %p168 = scmp.eq.s32.totalorder %s25, 1
      %p169 = por %p167, %p168
      %p170 = scmp.ne.s32.totalorder %s161, %s162
      %p171 = scmp.eq.s32.totalorder %s25, 0
      %p172 = por %p170, %p171
      %p173 = scmp.ne.s32.totalorder %s161, %s162
      %p174 = scmp.eq.s32.totalorder %s26, 1
      %p175 = por %p173, %p174
      %p177 = scmp.ne.s32.totalorder %s162, %s176
      %p178 = scmp.eq.s32.totalorder %s26, 0
      %p179 = por %p177, %p178
      %s180 = ssub.s32 %s20, %s27
      %p181 = scmp.eq.s32.totalorder %s180, 0
      %s183 = sadd.s32 %s182, 1
      %s184 = scalar_select %p181, %s182, %s183
      %p187 = pneg %p181
      %p188 = scmp.eq.s32.totalorder %s20, 1
      %p189 = por %p187, %p188
      %p190 = scmp.ne.s32.totalorder %s182, %s185
      %p191 = scmp.eq.s32.totalorder %s20, 0
      %p192 = por %p190, %p191
      %p193 = scmp.ne.s32.totalorder %s182, %s185
      %p194 = scmp.eq.s32.totalorder %s25, 1
      %p195 = por %p193, %p194
      %p196 = scmp.ne.s32.totalorder %s185, %s186
      %p197 = scmp.eq.s32.totalorder %s25, 0
      %p198 = por %p196, %p197
      %p199 = scmp.ne.s32.totalorder %s185, %s186
      %p200 = scmp.eq.s32.totalorder %s26, 1
      %p201 = por %p199, %p200
      %p203 = scmp.ne.s32.totalorder %s186, %s202
      %p204 = scmp.eq.s32.totalorder %s26, 0
      %p205 = por %p203, %p204
      %s207 = sadd.s32 %s206, 1
      %p210 = scmp.eq.s32.totalorder %s20, 1
      %p211 = scmp.ne.s32.totalorder %s206, %s208
      %p212 = scmp.eq.s32.totalorder %s20, 0
      %p213 = por %p211, %p212
      %p214 = scmp.ne.s32.totalorder %s206, %s208
      %p215 = scmp.eq.s32.totalorder %s25, 1
      %p216 = por %p214, %p215
      %p217 = scmp.ne.s32.totalorder %s208, %s209
      %p218 = scmp.eq.s32.totalorder %s25, 0
      %p219 = por %p217, %p218
      %p220 = scmp.ne.s32.totalorder %s208, %s209
      %p221 = scmp.eq.s32.totalorder %s26, 1
      %p222 = por %p220, %p221
      %p224 = scmp.ne.s32.totalorder %s209, %s223
      %p225 = scmp.eq.s32.totalorder %s26, 0
      %p226 = por %p224, %p225
      %s228 = sadd.s32 %s227, 1
      %p231 = scmp.eq.s32.totalorder %s20, 1
      %p232 = scmp.ne.s32.totalorder %s227, %s229
      %p233 = scmp.eq.s32.totalorder %s20, 0
      %p234 = por %p232, %p233
      %p235 = scmp.ne.s32.totalorder %s227, %s229
      %p236 = scmp.eq.s32.totalorder %s25, 1
      %p237 = por %p235, %p236
      %p238 = scmp.ne.s32.totalorder %s229, %s230
      %p239 = scmp.eq.s32.totalorder %s25, 0
      %p240 = por %p238, %p239
      %p241 = scmp.ne.s32.totalorder %s229, %s230
      %p242 = scmp.eq.s32.totalorder %s26, 1
      %p243 = por %p241, %p242
      %p245 = scmp.ne.s32.totalorder %s230, %s244
      %p246 = scmp.eq.s32.totalorder %s26, 0
      %p247 = por %p245, %p246
      %p248 = scmp.le.s32.totalorder 1, %s20
      %p249 = scmp.lt.s32.totalorder %s20, 3
      %p250 = pnand %p248, %p249
      %p251 = pneg %p250
      // Predicated region
      $region9: #{tpu_custom_call.1} parent=5 // pred_check
        _
      $region10: #{tpu_custom_call.1} parent=5 // pred_check_branch
        %253 = sbr.rel (%p250) target = $region12
      $region11: #{tpu_custom_call.1} parent=5 // pred_region
        %s254 = ssub.s32 %s20, 1
        // Predicated region
        $region13: #{tpu_custom_call.1} parent=11 // pred_check
          %p255 = pneg %p41
        $region14: #{tpu_custom_call.1} parent=11 // pred_check_branch
          %257 = sbr.rel (%p255) target = $region16
        $region15: #{tpu_custom_call.1} parent=11 // pred_region
          _
        $region16: #{tpu_custom_call.1} parent=11 // pred_fallthru
          _
        // Predicated region
        $region17: #{tpu_custom_call.1} parent=11 // pred_check
          %p258 = pneg %p88
        $region18: #{tpu_custom_call.1} parent=11 // pred_check_branch
          %260 = sbr.rel (%p258) target = $region20
        $region19: #{tpu_custom_call.1} parent=11 // pred_region
          _
        $region20: #{tpu_custom_call.1} parent=11 // pred_fallthru
          _
        // Predicated region
        $region21: #{tpu_custom_call.1} parent=11 // pred_check
          %p261 = pneg %p109
        $region22: #{tpu_custom_call.1} parent=11 // pred_check_branch
          %263 = sbr.rel (%p261) target = $region24
        $region23: #{tpu_custom_call.1} parent=11 // pred_region
          _
        $region24: #{tpu_custom_call.1} parent=11 // pred_fallthru
          _
        // Predicated region
        $region25: #{tpu_custom_call.1} parent=11 // pred_check
          %p264 = pneg %p130
        $region26: #{tpu_custom_call.1} parent=11 // pred_check_branch
          %266 = sbr.rel (%p264) target = $region28
        $region27: #{tpu_custom_call.1} parent=11 // pred_region
          _
        $region28: #{tpu_custom_call.1} parent=11 // pred_fallthru
          _
        // Predicated region
        $region29: #{tpu_custom_call.1} parent=11 // pred_check
          %p267 = pneg %p151
        $region30: #{tpu_custom_call.1} parent=11 // pred_check_branch
          %269 = sbr.rel (%p267) target = $region32
        $region31: #{tpu_custom_call.1} parent=11 // pred_region
          _
        $region32: #{tpu_custom_call.1} parent=11 // pred_fallthru
          _
        // Predicated region
        $region33: #{tpu_custom_call.1} parent=11 // pred_check
          %p270 = pneg %p172
        $region34: #{tpu_custom_call.1} parent=11 // pred_check_branch
          %272 = sbr.rel (%p270) target = $region36
        $region35: #{tpu_custom_call.1} parent=11 // pred_region
          _
        $region36: #{tpu_custom_call.1} parent=11 // pred_fallthru
          _
      $region12: #{tpu_custom_call.1} parent=5 // pred_fallthru
        _
      %p273 = scmp.lt.s32.totalorder %s20, 2
      // Predicated region
      $region37: #{tpu_custom_call.1} parent=5 // pred_check
        %p274 = pneg %p273
      $region38: #{tpu_custom_call.1} parent=5 // pred_check_branch
        %276 = sbr.rel (%p274) target = $region40
      $region39: #{tpu_custom_call.1} parent=5 // pred_region
        // Predicated region
        $region41: #{tpu_custom_call.1} parent=39 // pred_check
          %p277 = pneg %p61
        $region42: #{tpu_custom_call.1} parent=39 // pred_check_branch
          %279 = sbr.rel (%p277) target = $region44
        $region43: #{tpu_custom_call.1} parent=39 // pred_region
          %s280 = smul.u32 2, %s20
          %p281 = scmp.lt.s32.totalorder %s280, 3
          %s282 = scalar_select %p281, %s280, 3
          %s283 = smul.addr %s282, 8
          %s284 = scalar_lea.vmem %s1, %s283
          %s285 = smul.u32 2, %s20
        $region44: #{tpu_custom_call.1} parent=39 // pred_fallthru
          _
      $region40: #{tpu_custom_call.1} parent=5 // pred_fallthru
        _
      %p286 = scmp.le.s32.totalorder 1, %s20
      %p287 = scmp.lt.s32.totalorder %s20, 3
      %p288 = pnand %p286, %p287
      %p289 = pneg %p288
      // Predicated region
      $region45: #{tpu_custom_call.1} parent=5 // pred_check
        _
      $region46: #{tpu_custom_call.1} parent=5 // pred_check_branch
        %291 = sbr.rel (%p288) target = $region48
      $region47: #{tpu_custom_call.1} parent=5 // pred_region
        %s292 = ssub.s32 %s20, 1
        %p293 = pneg %p41
        %p294 = pneg %p38
        %s295 = smul.u32 2, %s25
        %p296 = scmp.lt.s32.totalorder %s295, 3
        %s297 = scalar_select %p296, %s295, 3
        %s298 = smul.addr %s297, 8
        %s299 = scalar_lea.vmem %s1, %s298
        %p300 = pneg %p67
        %p301 = pneg %p64
        %p302 = pneg %p88
        %p303 = pneg %p85
        %p304 = pneg %p109
        %p305 = pneg %p106
        %p306 = pneg %p130
        %p307 = pneg %p127
        %p308 = pneg %p151
        %p309 = pneg %p148
        %p310 = pneg %p172
        %p311 = pneg %p169
        %p312 = pneg %p198
        %p313 = pneg %p195
        %s314 = sand.u32 %s185, 1
        %s315 = scalar_lea.sflag [#allocation6], %s314
        %s316 = sand.u32 %s185, 1
        %s317 = smul.addr %s316, 16
        %s318 = scalar_lea.vmem [#allocation5], %s317
        %p319 = pneg %p219
        %p320 = pneg %p216
        %p321 = pneg %p240
        %p322 = pneg %p237
        %s323 = smul.u32 2, %s25
        %p324 = scmp.lt.s32.totalorder %s323, 3
        %s325 = scalar_select %p324, %s323, 3
        %s326 = smul.addr %s325, 8
        %s327 = scalar_lea.vmem %s1, %s326
        %s328 = smul.u32 2, %s25
        %s329 = smul.u32 8, %s25
        %p330 = scmp.eq.s32.totalorder %s25, 0
        // Predicated region
        $region49: #{tpu_custom_call.1} parent=47 // pred_check
          %p331 = pneg %p330
        $region50: #{tpu_custom_call.1} parent=47 // pred_check_branch
          %333 = sbr.rel (%p331) target = $region52
        $region51: #{tpu_custom_call.1} parent=47 // pred_region
          %v334 = vld [vmem:[%s5] sm:$0x3]
          %vm335 = vcmask 254976
          %336 = vst.msk [vmem:[#allocation3] sm:$0x3] %vm335, %v334
          %v337 = vld [vmem:[%s6] sm:$0x3]
          %338 = vst.msk [vmem:[#allocation4] sm:$0x3] %vm335, %v337
        $region52: #{tpu_custom_call.1} parent=47 // pred_fallthru
          _
        %v339 = vld [vmem:[%s327] sm:$0xff]
        %v340 = vld [vmem:[%s327 + $0x8] sm:$0xff]
        %v341 = vld [vmem:[%s2] sm:$0xff]
        %v342 = vld [vmem:[%s2 + $0x8] sm:$0xff]
        %v343 = vld [vmem:[%s2 + $0x10] sm:$0xff]
        %v344 = vld [vmem:[%s4] sm:$0x1]
        %v346 = vperm.slane %v344, 0
        %vm348 = vcmask 195584
        %v350 = vsel %vm348, %v339, 0
        %v353 = vsel %vm348, %v340, 0
        %355 = vmatpush.msra.mxu0 0.0
        %356 = vmatpush.msra.mxu0 0.0
        %357 = vmatpush.msra.mxu0 0.0
        %358 = vmatpush.msra.mxu0 0.0
        %359 = vmatpush.msra.mxu0 0.0
        %360 = vmatpush.msra.mxu0 0.0
        %361 = vmatpush.msra.mxu0 0.0
        %362 = vmatpush.msra.mxu0 0.0
        %363 = vmatpush.msra.mxu0 0.0
        %364 = vmatpush.msra.mxu0 0.0
        %365 = vmatpush.msra.mxu0 0.0
        %366 = vmatpush.msra.mxu0 0.0
        %367 = vmatpush.msra.mxu0 0.0
        %368 = vmatpush.msra.mxu0 %v343
        %369 = vmatpush.msra.mxu0 %v342
        %370 = vmatpush.msra.mxu0 %v341
        %371 = vmatmul.f32.gmra.mxu0 %v350
        %v372 = vpop.f32.mrf.mxu0
        %v373 = vadd.f32 %v346, %v372
        %374 = vmatmul.f32.gmra.mxu0 %v353
        %v375 = vpop.f32.mrf.mxu0
        %v376 = vadd.f32 %v346, %v375
        %377 = vdwg.mxu0
        %378 = vst [vmem:[#allocation2] sm:$0xff] %v373
        %379 = vst [vmem:[#allocation2 + $0x8] sm:$0xff] %v376
        %v380 = vld [vmem:[%s3] sm:$0xff]
        %v381 = vld [vmem:[%s3 + $0x8] sm:$0xff]
        %v382 = vld [vmem:[%s3 + $0x10] sm:$0xff]
        %v383 = vld [vmem:[%s3 + $0x18] sm:$0xff]
        %v384 = vld [vmem:[%s0] sm:$0x3]
        %s385 = smul.u32 %s25, 8
        %v386 = vld [vmem:[#allocation3] sm:$0x3]
        %v387 = vld [vmem:[#allocation4] sm:$0x3]
        %v388 = vld [vmem:[#allocation2] sm:$0x3]
        %vm389 = vcmask 261120
        %v391 = vsel %vm389, %v386, 0
        %393 = vmatpush.msra.mxu0 0.0
        %394 = vmatpush.msra.mxu0 0.0
        %395 = vmatpush.msra.mxu0 0.0
        %396 = vmatpush.msra.mxu0 0.0
        %397 = vmatpush.msra.mxu0 0.0
        %398 = vmatpush.msra.mxu0 0.0
        %399 = vmatpush.msra.mxu0 0.0
        %400 = vmatpush.msra.mxu0 0.0
        %401 = vmatpush.msra.mxu0 0.0
        %402 = vmatpush.msra.mxu0 0.0
        %403 = vmatpush.msra.mxu0 0.0
        %404 = vmatpush.msra.mxu0 0.0
        %405 = vmatpush.msra.mxu0 %v383
        %406 = vmatpush.msra.mxu0 %v382
        %407 = vmatpush.msra.mxu0 %v381
        %408 = vmatpush.msra.mxu0 %v380
        %409 = vmatmul.f32.gmra.mxu0 %v391
        %v410 = vpop.f32.mrf.mxu0
        %v411 = vadd.f32 0.0, %v410
        %412 = vdwg.mxu0
        %v413 = vadd.f32 %v388, %v411
        %v414 = vstv %s385
        %vm415 = vcmp.lt.s32.totalorder %v414, %v384
        %v416 = vsel %vm415, 1, 0
        %v417 = vcvt.s32.f32 %v416
        %v418 = vxor.u32 %v413, 2147483648
        %v419 = vmul.f32 %v418, 1.442695
        %v420 = vpow.pop %v419
        %v421 = vadd.f32 %v420, 1.0
        %v422 = vrcp.pop %v421
        %v423 = vmul.f32 %v421, %v422
        %v424 = vsub.f32 1.0, %v423
        %v425 = vmul.f32 %v422, %v424
        %v426 = vadd.f32 %v422, %v425
        %vm427 = vweird.f32 %v421
        %vm428 = vweird.f32 %v422
        %vm429 = vmor %vm427, %vm428
        %v430 = vsel %vm429, %v422, %v426
        %v431 = vand.u32 2147483647, %v421
        %vm432 = vcmp.eq.f32.partialorder %v431, 8.507059e+37
        %v433 = vand.u32 %v421, 2147483648
        %v434 = vor.u32 1.1754944e-38, %v433
        %v435 = vsel %vm432, %v434, %v430
        %v436 = vmul.f32 1.0, %v435
        %v437 = vtanh.pop %v413
        %439 = vrot.lane.b32.xlu0 %v387, 32
        %v440 = vpop.permute.xlu0 %439
        %v442 = vmul.f32 %v436, %v440
        %444 = vrot.lane.b32.xlu0 %v437, 64
        %v445 = vpop.permute.xlu0 %444
        %v447 = vmul.f32 %v436, %v445
        %449 = vrot.lane.b32.xlu0 %v447, 32
        %v450 = vpop.permute.xlu0 %449
        %v452 = vadd.f32 %v442, %v450
        %v453 = vtanh.pop %v452
        %455 = vrot.lane.b32.xlu0 %v453, 64
        %v456 = vpop.permute.xlu0 %455
        %v458 = vmul.f32 %v436, %v456
        %460 = vset.pattern.permute.xlu0 0
        %461 = vperm.xlu0 %460, %v417
        %v462 = vpop.permute.xlu0 %461
        %v464 = vmul.f32 %v462, %v458
        %466 = vrot.lane.b32.xlu0 %v464, 32
        %v467 = vpop.permute.xlu0 %466
        %vm469 = vcmask 254976
        %470 = vst.msk [vmem:[%s318] sm:$0x3] %vm469, %v467
        %v471 = vsub.f32 1.0, %v417
        %473 = vset.pattern.permute.xlu0 0
        %474 = vperm.xlu0 %473, %v471
        %v475 = vpop.permute.xlu0 %474
        %v477 = vmul.f32 %v475, %v386
        %479 = vrot.lane.b32.xlu0 %v477, 96
        %v480 = vpop.permute.xlu0 %479
        %v482 = vadd.f32 %v464, %v480
        %v483 = vmul.f32 %v462, %v452
        %v484 = vmul.f32 %v475, %v387
        %486 = vrot.lane.b32.xlu0 %v484, 32
        %v487 = vpop.permute.xlu0 %486
        %v489 = vadd.f32 %v483, %v487
        %s490 = scalar_lea.vmem [#allocation2], 2
        %v491 = vld [vmem:[%s490] sm:$0x3]
        %493 = vrot.lane.b32.xlu0 %v482, 32
        %v494 = vpop.permute.xlu0 %493
        %v495 = vsel %vm389, %v494, 0
        %497 = vmatpush.msra.mxu0 0.0
        %498 = vmatpush.msra.mxu0 0.0
        %499 = vmatpush.msra.mxu0 0.0
        %500 = vmatpush.msra.mxu0 0.0
        %501 = vmatpush.msra.mxu0 0.0
        %502 = vmatpush.msra.mxu0 0.0
        %503 = vmatpush.msra.mxu0 0.0
        %504 = vmatpush.msra.mxu0 0.0
        %505 = vmatpush.msra.mxu0 0.0
        %506 = vmatpush.msra.mxu0 0.0
        %507 = vmatpush.msra.mxu0 0.0
        %508 = vmatpush.msra.mxu0 0.0
        %509 = vmatpush.msra.mxu0 %v383
        %510 = vmatpush.msra.mxu0 %v382
        %511 = vmatpush.msra.mxu0 %v381
        %512 = vmatpush.msra.mxu0 %v380
        %513 = vmatmul.f32.gmra.mxu0 %v495
        %v514 = vpop.f32.mrf.mxu0
        %v515 = vadd.f32 0.0, %v514
        %516 = vdwg.mxu0
        %v517 = vadd.f32 %v491, %v515
        %s518 = sadd.s32 %s385, 1
        %v519 = vstv %s518
        %vm520 = vcmp.lt.s32.totalorder %v519, %v384
        %v521 = vsel %vm520, 1, 0
        %v522 = vcvt.s32.f32 %v521
        %v523 = vxor.u32 %v517, 2147483648
        %v524 = vmul.f32 %v523, 1.442695
        %v525 = vpow.pop %v524
        %v526 = vadd.f32 %v525, 1.0
        %v527 = vrcp.pop %v526
        %v528 = vmul.f32 %v526, %v527
        %v529 = vsub.f32 1.0, %v528
        %v530 = vmul.f32 %v527, %v529
        %v531 = vadd.f32 %v527, %v530
        %vm532 = vweird.f32 %v526
        %vm533 = vweird.f32 %v527
        %vm534 = vmor %vm532, %vm533
        %v535 = vsel %vm534, %v527, %v531
        %v536 = vand.u32 2147483647, %v526
        %vm537 = vcmp.eq.f32.partialorder %v536, 8.507059e+37
        %v538 = vand.u32 %v526, 2147483648
        %v539 = vor.u32 1.1754944e-38, %v538
        %v540 = vsel %vm537, %v539, %v535
        %v541 = vmul.f32 1.0, %v540
        %v542 = vtanh.pop %v517
        %v543 = vmul.f32 %v541, %v489
        %545 = vrot.lane.b32.xlu0 %v542, 64
        %v546 = vpop.permute.xlu0 %545
        %v548 = vmul.f32 %v541, %v546
        %550 = vrot.lane.b32.xlu0 %v548, 32
        %v551 = vpop.permute.xlu0 %550
        %v553 = vadd.f32 %v543, %v551
        %v554 = vtanh.pop %v553
        %556 = vrot.lane.b32.xlu0 %v554, 64
        %v557 = vpop.permute.xlu0 %556
        %v559 = vmul.f32 %v541, %v557
        %561 = vset.pattern.permute.xlu0 0
        %562 = vperm.xlu0 %561, %v522
        %v563 = vpop.permute.xlu0 %562
        %v565 = vmul.f32 %v563, %v559
        %567 = vrot.lane.b32.xlu0 %v565, 32
        %v568 = vpop.permute.xlu0 %567
        %s570 = scalar_lea.vmem %s318, 2 [#allocation5]
        %571 = vst.msk [vmem:[%s570] sm:$0x3] %vm469, %v568
        %v572 = vsub.f32 1.0, %v522
        %574 = vset.pattern.permute.xlu0 0
        %575 = vperm.xlu0 %574, %v572
        %v576 = vpop.permute.xlu0 %575
        %v578 = vmul.f32 %v576, %v482
        %v579 = vadd.f32 %v565, %v578
        %v580 = vmul.f32 %v563, %v553
        %v581 = vmul.f32 %v576, %v489
        %v582 = vadd.f32 %v580, %v581
        %s583 = scalar_lea.vmem [#allocation2], 4
        %v584 = vld [vmem:[%s583] sm:$0x3]
        %586 = vrot.lane.b32.xlu0 %v579, 32
        %v587 = vpop.permute.xlu0 %586
        %v588 = vsel %vm389, %v587, 0
        %590 = vmatpush.msra.mxu0 0.0
        %591 = vmatpush.msra.mxu0 0.0
        %592 = vmatpush.msra.mxu0 0.0
        %593 = vmatpush.msra.mxu0 0.0
        %594 = vmatpush.msra.mxu0 0.0
        %595 = vmatpush.msra.mxu0 0.0
        %596 = vmatpush.msra.mxu0 0.0
        %597 = vmatpush.msra.mxu0 0.0
        %598 = vmatpush.msra.mxu0 0.0
        %599 = vmatpush.msra.mxu0 0.0
        %600 = vmatpush.msra.mxu0 0.0
        %601 = vmatpush.msra.mxu0 0.0
        %602 = vmatpush.msra.mxu0 %v383
        %603 = vmatpush.msra.mxu0 %v382
        %604 = vmatpush.msra.mxu0 %v381
        %605 = vmatpush.msra.mxu0 %v380
        %606 = vmatmul.f32.gmra.mxu0 %v588
        %v607 = vpop.f32.mrf.mxu0
        %v608 = vadd.f32 0.0, %v607
        %609 = vdwg.mxu0
        %v610 = vadd.f32 %v584, %v608
        %s611 = sadd.s32 %s385, 2
        %v612 = vstv %s611
        %vm613 = vcmp.lt.s32.totalorder %v612, %v384
        %v614 = vsel %vm613, 1, 0
        %v615 = vcvt.s32.f32 %v614
        %v616 = vxor.u32 %v610, 2147483648
        %v617 = vmul.f32 %v616, 1.442695
        %v618 = vpow.pop %v617
        %v619 = vadd.f32 %v618, 1.0
        %v620 = vrcp.pop %v619
        %v621 = vmul.f32 %v619, %v620
        %v622 = vsub.f32 1.0, %v621
        %v623 = vmul.f32 %v620, %v622
        %v624 = vadd.f32 %v620, %v623
        %vm625 = vweird.f32 %v619
        %vm626 = vweird.f32 %v620
        %vm627 = vmor %vm625, %vm626
        %v628 = vsel %vm627, %v620, %v624
        %v629 = vand.u32 2147483647, %v619
        %vm630 = vcmp.eq.f32.partialorder %v629, 8.507059e+37
        %v631 = vand.u32 %v619, 2147483648
        %v632 = vor.u32 1.1754944e-38, %v631
        %v633 = vsel %vm630, %v632, %v628
        %v634 = vmul.f32 1.0, %v633
        %v635 = vtanh.pop %v610
        %v636 = vmul.f32 %v634, %v582
        %638 = vrot.lane.b32.xlu0 %v635, 64
        %v639 = vpop.permute.xlu0 %638
        %v641 = vmul.f32 %v634, %v639
        %643 = vrot.lane.b32.xlu0 %v641, 32
        %v644 = vpop.permute.xlu0 %643
        %v646 = vadd.f32 %v636, %v644
        %v647 = vtanh.pop %v646
        %649 = vrot.lane.b32.xlu0 %v647, 64
        %v650 = vpop.permute.xlu0 %649
        %v652 = vmul.f32 %v634, %v650
        %654 = vset.pattern.permute.xlu0 0
        %655 = vperm.xlu0 %654, %v615
        %v656 = vpop.permute.xlu0 %655
        %v658 = vmul.f32 %v656, %v652
        %660 = vrot.lane.b32.xlu0 %v658, 32
        %v661 = vpop.permute.xlu0 %660
        %s663 = scalar_lea.vmem %s318, 4 [#allocation5]
        %664 = vst.msk [vmem:[%s663] sm:$0x3] %vm469, %v661
        %v665 = vsub.f32 1.0, %v615
        %667 = vset.pattern.permute.xlu0 0
        %668 = vperm.xlu0 %667, %v665
        %v669 = vpop.permute.xlu0 %668
        %v671 = vmul.f32 %v669, %v579
        %v672 = vadd.f32 %v658, %v671
        %v673 = vmul.f32 %v656, %v646
        %v674 = vmul.f32 %v669, %v582
        %v675 = vadd.f32 %v673, %v674
        %s676 = scalar_lea.vmem [#allocation2], 6
        %v677 = vld [vmem:[%s676] sm:$0x3]
        %679 = vrot.lane.b32.xlu0 %v672, 32
        %v680 = vpop.permute.xlu0 %679
        %v681 = vsel %vm389, %v680, 0
        %683 = vmatpush.msra.mxu0 0.0
        %684 = vmatpush.msra.mxu0 0.0
        %685 = vmatpush.msra.mxu0 0.0
        %686 = vmatpush.msra.mxu0 0.0
        %687 = vmatpush.msra.mxu0 0.0
        %688 = vmatpush.msra.mxu0 0.0
        %689 = vmatpush.msra.mxu0 0.0
        %690 = vmatpush.msra.mxu0 0.0
        %691 = vmatpush.msra.mxu0 0.0
        %692 = vmatpush.msra.mxu0 0.0
        %693 = vmatpush.msra.mxu0 0.0
        %694 = vmatpush.msra.mxu0 0.0
        %695 = vmatpush.msra.mxu0 %v383
        %696 = vmatpush.msra.mxu0 %v382
        %697 = vmatpush.msra.mxu0 %v381
        %698 = vmatpush.msra.mxu0 %v380
        %699 = vmatmul.f32.gmra.mxu0 %v681
        %v700 = vpop.f32.mrf.mxu0
        %v701 = vadd.f32 0.0, %v700
        %702 = vdwg.mxu0
        %v703 = vadd.f32 %v677, %v701
        %s704 = sadd.s32 %s385, 3
        %v705 = vstv %s704
        %vm706 = vcmp.lt.s32.totalorder %v705, %v384
        %v707 = vsel %vm706, 1, 0
        %v708 = vcvt.s32.f32 %v707
        %v709 = vxor.u32 %v703, 2147483648
        %v710 = vmul.f32 %v709, 1.442695
        %v711 = vpow.pop %v710
        %v712 = vadd.f32 %v711, 1.0
        %v713 = vrcp.pop %v712
        %v714 = vmul.f32 %v712, %v713
        %v715 = vsub.f32 1.0, %v714
        %v716 = vmul.f32 %v713, %v715
        %v717 = vadd.f32 %v713, %v716
        %vm718 = vweird.f32 %v712
        %vm719 = vweird.f32 %v713
        %vm720 = vmor %vm718, %vm719
        %v721 = vsel %vm720, %v713, %v717
        %v722 = vand.u32 2147483647, %v712
        %vm723 = vcmp.eq.f32.partialorder %v722, 8.507059e+37
        %v724 = vand.u32 %v712, 2147483648
        %v725 = vor.u32 1.1754944e-38, %v724
        %v726 = vsel %vm723, %v725, %v721
        %v727 = vmul.f32 1.0, %v726
        %v728 = vtanh.pop %v703
        %v729 = vmul.f32 %v727, %v675
        %731 = vrot.lane.b32.xlu0 %v728, 64
        %v732 = vpop.permute.xlu0 %731
        %v734 = vmul.f32 %v727, %v732
        %736 = vrot.lane.b32.xlu0 %v734, 32
        %v737 = vpop.permute.xlu0 %736
        %v739 = vadd.f32 %v729, %v737
        %v740 = vtanh.pop %v739
        %742 = vrot.lane.b32.xlu0 %v740, 64
        %v743 = vpop.permute.xlu0 %742
        %v745 = vmul.f32 %v727, %v743
        %747 = vset.pattern.permute.xlu0 0
        %748 = vperm.xlu0 %747, %v708
        %v749 = vpop.permute.xlu0 %748
        %v751 = vmul.f32 %v749, %v745
        %753 = vrot.lane.b32.xlu0 %v751, 32
        %v754 = vpop.permute.xlu0 %753
        %s756 = scalar_lea.vmem %s318, 6 [#allocation5]
        %757 = vst.msk [vmem:[%s756] sm:$0x3] %vm469, %v754
        %v758 = vsub.f32 1.0, %v708
        %760 = vset.pattern.permute.xlu0 0
        %761 = vperm.xlu0 %760, %v758
        %v762 = vpop.permute.xlu0 %761
        %v764 = vmul.f32 %v762, %v672
        %v765 = vadd.f32 %v751, %v764
        %v766 = vmul.f32 %v749, %v739
        %v767 = vmul.f32 %v762, %v675
        %v768 = vadd.f32 %v766, %v767
        %s769 = scalar_lea.vmem [#allocation2], 8
        %v770 = vld [vmem:[%s769] sm:$0x3]
        %772 = vrot.lane.b32.xlu0 %v765, 32
        %v773 = vpop.permute.xlu0 %772
        %v774 = vsel %vm389, %v773, 0
        %776 = vmatpush.msra.mxu0 0.0
        %777 = vmatpush.msra.mxu0 0.0
        %778 = vmatpush.msra.mxu0 0.0
        %779 = vmatpush.msra.mxu0 0.0
        %780 = vmatpush.msra.mxu0 0.0
        %781 = vmatpush.msra.mxu0 0.0
        %782 = vmatpush.msra.mxu0 0.0
        %783 = vmatpush.msra.mxu0 0.0
        %784 = vmatpush.msra.mxu0 0.0
        %785 = vmatpush.msra.mxu0 0.0
        %786 = vmatpush.msra.mxu0 0.0
        %787 = vmatpush.msra.mxu0 0.0
        %788 = vmatpush.msra.mxu0 %v383
        %789 = vmatpush.msra.mxu0 %v382
        %790 = vmatpush.msra.mxu0 %v381
        %791 = vmatpush.msra.mxu0 %v380
        %792 = vmatmul.f32.gmra.mxu0 %v774
        %v793 = vpop.f32.mrf.mxu0
        %v794 = vadd.f32 0.0, %v793
        %795 = vdwg.mxu0
        %v796 = vadd.f32 %v770, %v794
        %s797 = sadd.s32 %s385, 4
        %v798 = vstv %s797
        %vm799 = vcmp.lt.s32.totalorder %v798, %v384
        %v800 = vsel %vm799, 1, 0
        %v801 = vcvt.s32.f32 %v800
        %v802 = vxor.u32 %v796, 2147483648
        %v803 = vmul.f32 %v802, 1.442695
        %v804 = vpow.pop %v803
        %v805 = vadd.f32 %v804, 1.0
        %v806 = vrcp.pop %v805
        %v807 = vmul.f32 %v805, %v806
        %v808 = vsub.f32 1.0, %v807
        %v809 = vmul.f32 %v806, %v808
        %v810 = vadd.f32 %v806, %v809
        %vm811 = vweird.f32 %v805
        %vm812 = vweird.f32 %v806
        %vm813 = vmor %vm811, %vm812
        %v814 = vsel %vm813, %v806, %v810
        %v815 = vand.u32 2147483647, %v805
        %vm816 = vcmp.eq.f32.partialorder %v815, 8.507059e+37
        %v817 = vand.u32 %v805, 2147483648
        %v818 = vor.u32 1.1754944e-38, %v817
        %v819 = vsel %vm816, %v818, %v814
        %v820 = vmul.f32 1.0, %v819
        %v821 = vtanh.pop %v796
        %v822 = vmul.f32 %v820, %v768
        %824 = vrot.lane.b32.xlu0 %v821, 64
        %v825 = vpop.permute.xlu0 %824
        %v827 = vmul.f32 %v820, %v825
        %829 = vrot.lane.b32.xlu0 %v827, 32
        %v830 = vpop.permute.xlu0 %829
        %v832 = vadd.f32 %v822, %v830
        %v833 = vtanh.pop %v832
        %835 = vrot.lane.b32.xlu0 %v833, 64
        %v836 = vpop.permute.xlu0 %835
        %v838 = vmul.f32 %v820, %v836
        %840 = vset.pattern.permute.xlu0 0
        %841 = vperm.xlu0 %840, %v801
        %v842 = vpop.permute.xlu0 %841
        %v844 = vmul.f32 %v842, %v838
        %846 = vrot.lane.b32.xlu0 %v844, 32
        %v847 = vpop.permute.xlu0 %846
        %s849 = scalar_lea.vmem %s318, 8 [#allocation5]
        %850 = vst.msk [vmem:[%s849] sm:$0x3] %vm469, %v847
        %v851 = vsub.f32 1.0, %v801
        %853 = vset.pattern.permute.xlu0 0
        %854 = vperm.xlu0 %853, %v851
        %v855 = vpop.permute.xlu0 %854
        %v857 = vmul.f32 %v855, %v765
        %v858 = vadd.f32 %v844, %v857
        %v859 = vmul.f32 %v842, %v832
        %v860 = vmul.f32 %v855, %v768
        %v861 = vadd.f32 %v859, %v860
        %s862 = scalar_lea.vmem [#allocation2], 10
        %v863 = vld [vmem:[%s862] sm:$0x3]
        %865 = vrot.lane.b32.xlu0 %v858, 32
        %v866 = vpop.permute.xlu0 %865
        %v867 = vsel %vm389, %v866, 0
        %869 = vmatpush.msra.mxu0 0.0
        %870 = vmatpush.msra.mxu0 0.0
        %871 = vmatpush.msra.mxu0 0.0
        %872 = vmatpush.msra.mxu0 0.0
        %873 = vmatpush.msra.mxu0 0.0
        %874 = vmatpush.msra.mxu0 0.0
        %875 = vmatpush.msra.mxu0 0.0
        %876 = vmatpush.msra.mxu0 0.0
        %877 = vmatpush.msra.mxu0 0.0
        %878 = vmatpush.msra.mxu0 0.0
        %879 = vmatpush.msra.mxu0 0.0
        %880 = vmatpush.msra.mxu0 0.0
        %881 = vmatpush.msra.mxu0 %v383
        %882 = vmatpush.msra.mxu0 %v382
        %883 = vmatpush.msra.mxu0 %v381
        %884 = vmatpush.msra.mxu0 %v380
        %885 = vmatmul.f32.gmra.mxu0 %v867
        %v886 = vpop.f32.mrf.mxu0
        %v887 = vadd.f32 0.0, %v886
        %888 = vdwg.mxu0
        %v889 = vadd.f32 %v863, %v887
        %s890 = sadd.s32 %s385, 5
        %v891 = vstv %s890
        %vm892 = vcmp.lt.s32.totalorder %v891, %v384
        %v893 = vsel %vm892, 1, 0
        %v894 = vcvt.s32.f32 %v893
        %v895 = vxor.u32 %v889, 2147483648
        %v896 = vmul.f32 %v895, 1.442695
        %v897 = vpow.pop %v896
        %v898 = vadd.f32 %v897, 1.0
        %v899 = vrcp.pop %v898
        %v900 = vmul.f32 %v898, %v899
        %v901 = vsub.f32 1.0, %v900
        %v902 = vmul.f32 %v899, %v901
        %v903 = vadd.f32 %v899, %v902
        %vm904 = vweird.f32 %v898
        %vm905 = vweird.f32 %v899
        %vm906 = vmor %vm904, %vm905
        %v907 = vsel %vm906, %v899, %v903
        %v908 = vand.u32 2147483647, %v898
        %vm909 = vcmp.eq.f32.partialorder %v908, 8.507059e+37
        %v910 = vand.u32 %v898, 2147483648
        %v911 = vor.u32 1.1754944e-38, %v910
        %v912 = vsel %vm909, %v911, %v907
        %v913 = vmul.f32 1.0, %v912
        %v914 = vtanh.pop %v889
        %v915 = vmul.f32 %v913, %v861
        %917 = vrot.lane.b32.xlu0 %v914, 64
        %v918 = vpop.permute.xlu0 %917
        %v920 = vmul.f32 %v913, %v918
        %922 = vrot.lane.b32.xlu0 %v920, 32
        %v923 = vpop.permute.xlu0 %922
        %v925 = vadd.f32 %v915, %v923
        %v926 = vtanh.pop %v925
        %928 = vrot.lane.b32.xlu0 %v926, 64
        %v929 = vpop.permute.xlu0 %928
        %v931 = vmul.f32 %v913, %v929
        %933 = vset.pattern.permute.xlu0 0
        %934 = vperm.xlu0 %933, %v894
        %v935 = vpop.permute.xlu0 %934
        %v937 = vmul.f32 %v935, %v931
        %939 = vrot.lane.b32.xlu0 %v937, 32
        %v940 = vpop.permute.xlu0 %939
        %s942 = scalar_lea.vmem %s318, 10 [#allocation5]
        %943 = vst.msk [vmem:[%s942] sm:$0x3] %vm469, %v940
        %v944 = vsub.f32 1.0, %v894
        %946 = vset.pattern.permute.xlu0 0
        %947 = vperm.xlu0 %946, %v944
        %v948 = vpop.permute.xlu0 %947
        %v950 = vmul.f32 %v948, %v858
        %v951 = vadd.f32 %v937, %v950
        %v952 = vmul.f32 %v935, %v925
        %v953 = vmul.f32 %v948, %v861
        %v954 = vadd.f32 %v952, %v953
        %s955 = scalar_lea.vmem [#allocation2], 12
        %v956 = vld [vmem:[%s955] sm:$0x3]
        %958 = vrot.lane.b32.xlu0 %v951, 32
        %v959 = vpop.permute.xlu0 %958
        %v960 = vsel %vm389, %v959, 0
        %962 = vmatpush.msra.mxu0 0.0
        %963 = vmatpush.msra.mxu0 0.0
        %964 = vmatpush.msra.mxu0 0.0
        %965 = vmatpush.msra.mxu0 0.0
        %966 = vmatpush.msra.mxu0 0.0
        %967 = vmatpush.msra.mxu0 0.0
        %968 = vmatpush.msra.mxu0 0.0
        %969 = vmatpush.msra.mxu0 0.0
        %970 = vmatpush.msra.mxu0 0.0
        %971 = vmatpush.msra.mxu0 0.0
        %972 = vmatpush.msra.mxu0 0.0
        %973 = vmatpush.msra.mxu0 0.0
        %974 = vmatpush.msra.mxu0 %v383
        %975 = vmatpush.msra.mxu0 %v382
        %976 = vmatpush.msra.mxu0 %v381
        %977 = vmatpush.msra.mxu0 %v380
        %978 = vmatmul.f32.gmra.mxu0 %v960
        %v979 = vpop.f32.mrf.mxu0
        %v980 = vadd.f32 0.0, %v979
        %981 = vdwg.mxu0
        %v982 = vadd.f32 %v956, %v980
        %s983 = sadd.s32 %s385, 6
        %v984 = vstv %s983
        %vm985 = vcmp.lt.s32.totalorder %v984, %v384
        %v986 = vsel %vm985, 1, 0
        %v987 = vcvt.s32.f32 %v986
        %v988 = vxor.u32 %v982, 2147483648
        %v989 = vmul.f32 %v988, 1.442695
        %v990 = vpow.pop %v989
        %v991 = vadd.f32 %v990, 1.0
        %v992 = vrcp.pop %v991
        %v993 = vmul.f32 %v991, %v992
        %v994 = vsub.f32 1.0, %v993
        %v995 = vmul.f32 %v992, %v994
        %v996 = vadd.f32 %v992, %v995
        %vm997 = vweird.f32 %v991
        %vm998 = vweird.f32 %v992
        %vm999 = vmor %vm997, %vm998
        %v1000 = vsel %vm999, %v992, %v996
        %v1001 = vand.u32 2147483647, %v991
        %vm1002 = vcmp.eq.f32.partialorder %v1001, 8.507059e+37
        %v1003 = vand.u32 %v991, 2147483648
        %v1004 = vor.u32 1.1754944e-38, %v1003
        %v1005 = vsel %vm1002, %v1004, %v1000
        %v1006 = vmul.f32 1.0, %v1005
        %v1007 = vtanh.pop %v982
        %v1008 = vmul.f32 %v1006, %v954
        %1010 = vrot.lane.b32.xlu0 %v1007, 64
        %v1011 = vpop.permute.xlu0 %1010
        %v1013 = vmul.f32 %v1006, %v1011
        %1015 = vrot.lane.b32.xlu0 %v1013, 32
        %v1016 = vpop.permute.xlu0 %1015
        %v1018 = vadd.f32 %v1008, %v1016
        %v1019 = vtanh.pop %v1018
        %1021 = vrot.lane.b32.xlu0 %v1019, 64
        %v1022 = vpop.permute.xlu0 %1021
        %v1024 = vmul.f32 %v1006, %v1022
        %1026 = vset.pattern.permute.xlu0 0
        %1027 = vperm.xlu0 %1026, %v987
        %v1028 = vpop.permute.xlu0 %1027
        %v1030 = vmul.f32 %v1028, %v1024
        %1032 = vrot.lane.b32.xlu0 %v1030, 32
        %v1033 = vpop.permute.xlu0 %1032
        %s1035 = scalar_lea.vmem %s318, 12 [#allocation5]
        %1036 = vst.msk [vmem:[%s1035] sm:$0x3] %vm469, %v1033
        %v1037 = vsub.f32 1.0, %v987
        %1039 = vset.pattern.permute.xlu0 0
        %1040 = vperm.xlu0 %1039, %v1037
        %v1041 = vpop.permute.xlu0 %1040
        %v1043 = vmul.f32 %v1041, %v951
        %v1044 = vadd.f32 %v1030, %v1043
        %v1045 = vmul.f32 %v1028, %v1018
        %v1046 = vmul.f32 %v1041, %v954
        %v1047 = vadd.f32 %v1045, %v1046
        %s1048 = scalar_lea.vmem [#allocation2], 14
        %v1049 = vld [vmem:[%s1048] sm:$0x3]
        %1051 = vrot.lane.b32.xlu0 %v1044, 32
        %v1052 = vpop.permute.xlu0 %1051
        %v1053 = vsel %vm389, %v1052, 0
        %1055 = vmatpush.msra.mxu0 0.0
        %1056 = vmatpush.msra.mxu0 0.0
        %1057 = vmatpush.msra.mxu0 0.0
        %1058 = vmatpush.msra.mxu0 0.0
        %1059 = vmatpush.msra.mxu0 0.0
        %1060 = vmatpush.msra.mxu0 0.0
        %1061 = vmatpush.msra.mxu0 0.0
        %1062 = vmatpush.msra.mxu0 0.0
        %1063 = vmatpush.msra.mxu0 0.0
        %1064 = vmatpush.msra.mxu0 0.0
        %1065 = vmatpush.msra.mxu0 0.0
        %1066 = vmatpush.msra.mxu0 0.0
        %1067 = vmatpush.msra.mxu0 %v383
        %1068 = vmatpush.msra.mxu0 %v382
        %1069 = vmatpush.msra.mxu0 %v381
        %1070 = vmatpush.msra.mxu0 %v380
        %1071 = vmatmul.f32.gmra.mxu0 %v1053
        %v1072 = vpop.f32.mrf.mxu0
        %v1073 = vadd.f32 0.0, %v1072
        %1074 = vdwg.mxu0
        %v1075 = vadd.f32 %v1049, %v1073
        %s1076 = sadd.s32 %s385, 7
        %v1077 = vstv %s1076
        %vm1078 = vcmp.lt.s32.totalorder %v1077, %v384
        %v1079 = vsel %vm1078, 1, 0
        %v1080 = vcvt.s32.f32 %v1079
        %v1081 = vxor.u32 %v1075, 2147483648
        %v1082 = vmul.f32 %v1081, 1.442695
        %v1083 = vpow.pop %v1082
        %v1084 = vadd.f32 %v1083, 1.0
        %v1085 = vrcp.pop %v1084
        %v1086 = vmul.f32 %v1084, %v1085
        %v1087 = vsub.f32 1.0, %v1086
        %v1088 = vmul.f32 %v1085, %v1087
        %v1089 = vadd.f32 %v1085, %v1088
        %vm1090 = vweird.f32 %v1084
        %vm1091 = vweird.f32 %v1085
        %vm1092 = vmor %vm1090, %vm1091
        %v1093 = vsel %vm1092, %v1085, %v1089
        %v1094 = vand.u32 2147483647, %v1084
        %vm1095 = vcmp.eq.f32.partialorder %v1094, 8.507059e+37
        %v1096 = vand.u32 %v1084, 2147483648
        %v1097 = vor.u32 1.1754944e-38, %v1096
        %v1098 = vsel %vm1095, %v1097, %v1093
        %v1099 = vmul.f32 1.0, %v1098
        %v1100 = vtanh.pop %v1075
        %v1101 = vmul.f32 %v1099, %v1047
        %1103 = vrot.lane.b32.xlu0 %v1100, 64
        %v1104 = vpop.permute.xlu0 %1103
        %v1106 = vmul.f32 %v1099, %v1104
        %1108 = vrot.lane.b32.xlu0 %v1106, 32
        %v1109 = vpop.permute.xlu0 %1108
        %v1111 = vadd.f32 %v1101, %v1109
        %v1112 = vtanh.pop %v1111
        %1114 = vrot.lane.b32.xlu0 %v1112, 64
        %v1115 = vpop.permute.xlu0 %1114
        %v1117 = vmul.f32 %v1099, %v1115
        %1119 = vset.pattern.permute.xlu0 0
        %1120 = vperm.xlu0 %1119, %v1080
        %v1121 = vpop.permute.xlu0 %1120
        %v1123 = vmul.f32 %v1121, %v1117
        %1125 = vrot.lane.b32.xlu0 %v1123, 32
        %v1126 = vpop.permute.xlu0 %1125
        %s1128 = scalar_lea.vmem %s318, 14 [#allocation5]
        %1129 = vst.msk [vmem:[%s1128] sm:$0x3] %vm469, %v1126
        %v1130 = vsub.f32 1.0, %v1080
        %1132 = vset.pattern.permute.xlu0 0
        %1133 = vperm.xlu0 %1132, %v1130
        %v1134 = vpop.permute.xlu0 %1133
        %v1136 = vmul.f32 %v1134, %v1044
        %v1137 = vadd.f32 %v1123, %v1136
        %v1138 = vmul.f32 %v1121, %v1111
        %v1139 = vmul.f32 %v1134, %v1047
        %v1140 = vadd.f32 %v1138, %v1139
        %1142 = vrot.lane.b32.xlu0 %v1137, 32
        %v1143 = vpop.permute.xlu0 %1142
        %1145 = vst.msk [vmem:[#allocation3] sm:$0x3] %vm469, %v1143
        %1147 = vrot.lane.b32.xlu0 %v1140, 96
        %v1148 = vpop.permute.xlu0 %1147
        %1150 = vst.msk [vmem:[#allocation4] sm:$0x3] %vm469, %v1148
        %p1151 = scmp.eq.s32.totalorder %s25, 1
        // Predicated region
        $region53: #{tpu_custom_call.1} parent=47 // pred_check
          %p1152 = pneg %p1151
        $region54: #{tpu_custom_call.1} parent=47 // pred_check_branch
          %1154 = sbr.rel (%p1152) target = $region56
        $region55: #{tpu_custom_call.1} parent=47 // pred_region
          %v1155 = vld [vmem:[#allocation3] sm:$0x3]
          %1156 = vst.msk [vmem:[#allocation7] sm:$0x3] %vm469, %v1155
          %v1157 = vld [vmem:[#allocation4] sm:$0x3]
          %1158 = vst.msk [vmem:[#allocation9] sm:$0x3] %vm469, %v1157
        $region56: #{tpu_custom_call.1} parent=47 // pred_fallthru
          _
        %s1159 = sand.u32 %s185, 1
        %s1160 = scalar_lea.sflag [#allocation6], %s1159
        %s1161 = sand.u32 %s185, 1
        %s1162 = smul.addr %s1161, 16
        %s1163 = scalar_lea.vmem [#allocation5], %s1162
        // Predicated region
        $region57: #{tpu_custom_call.1} parent=47 // pred_check
          %p1164 = pneg %p195
        $region58: #{tpu_custom_call.1} parent=47 // pred_check_branch
          %1166 = sbr.rel (%p1164) target = $region60
        $region59: #{tpu_custom_call.1} parent=47 // pred_region
          %s1167 = smul.u32 8, %s25
          %1169 = vsyncadd %s1160, 0
          %s1170 = smul.addr %s1167, 2
          %s1171 = scalar_lea.hbm %s7, %s1170
          %s1172 = sshll.u32 %s1163, 4
          %s1173 = int_to_ptr.vmem [resolvable:$true] %s1172
          %s1174 = sshll.u32 %s1171, 4
          %s1175 = int_to_ptr.hbm [resolvable:$true] %s1174
          %1180 = dma.vmem_to_hbm [thread:$0]  %s1173, 256, %s1175, %s1160, 32, 32, 2
        $region60: #{tpu_custom_call.1} parent=47 // pred_fallthru
          _
        // Predicated region
        $region61: #{tpu_custom_call.1} parent=47 // pred_check
          %p1181 = pneg %p216
        $region62: #{tpu_custom_call.1} parent=47 // pred_check_branch
          %1183 = sbr.rel (%p1181) target = $region64
        $region63: #{tpu_custom_call.1} parent=47 // pred_region
          %1185 = vsyncadd [#allocation8], 0
          %s1187 = sshll.u32 [#allocation7], 4
          %s1188 = int_to_ptr.vmem [resolvable:$true] %s1187
          %s1189 = sshll.u32 %s8, 4
          %s1190 = int_to_ptr.hbm [resolvable:$true] %s1189
          %1192 = dma.vmem_to_hbm [thread:$0]  %s1188, 32, %s1190, [#allocation8]
        $region64: #{tpu_custom_call.1} parent=47 // pred_fallthru
          _
        // Predicated region
        $region65: #{tpu_custom_call.1} parent=47 // pred_check
          %p1193 = pneg %p237
        $region66: #{tpu_custom_call.1} parent=47 // pred_check_branch
          %1195 = sbr.rel (%p1193) target = $region68
        $region67: #{tpu_custom_call.1} parent=47 // pred_region
          %1197 = vsyncadd [#allocation8], 0
          %s1199 = sshll.u32 [#allocation9], 4
          %s1200 = int_to_ptr.vmem [resolvable:$true] %s1199
          %s1201 = sshll.u32 %s9, 4
          %s1202 = int_to_ptr.hbm [resolvable:$true] %s1201
          %1204 = dma.vmem_to_hbm [thread:$0]  %s1200, 32, %s1202, [#allocation8]
        $region68: #{tpu_custom_call.1} parent=47 // pred_fallthru
          _
        // Predicated region
        $region69: #{tpu_custom_call.1} parent=47 // pred_check
          %p1205 = pneg %p216
        $region70: #{tpu_custom_call.1} parent=47 // pred_check_branch
          %1207 = sbr.rel (%p1205) target = $region72
        $region71: #{tpu_custom_call.1} parent=47 // pred_region
          %1209 = dma.done [#allocation8], 32
        $region72: #{tpu_custom_call.1} parent=47 // pred_fallthru
          _
        // Predicated region
        $region73: #{tpu_custom_call.1} parent=47 // pred_check
          %p1210 = pneg %p237
        $region74: #{tpu_custom_call.1} parent=47 // pred_check_branch
          %1212 = sbr.rel (%p1210) target = $region76
        $region75: #{tpu_custom_call.1} parent=47 // pred_region
          %1214 = dma.done [#allocation8], 32
        $region76: #{tpu_custom_call.1} parent=47 // pred_fallthru
          _
      $region48: #{tpu_custom_call.1} parent=5 // pred_fallthru
        _
      %p1215 = scmp.le.s32.totalorder 2, %s20
      // Predicated region
      $region77: #{tpu_custom_call.1} parent=5 // pred_check
        %p1216 = pneg %p1215
      $region78: #{tpu_custom_call.1} parent=5 // pred_check_branch
        %1218 = sbr.rel (%p1216) target = $region80
      $region79: #{tpu_custom_call.1} parent=5 // pred_region
        %s1219 = ssub.s32 %s20, 2
        // Predicated region
        $region81: #{tpu_custom_call.1} parent=79 // pred_check
          %p1220 = pneg %p201
        $region82: #{tpu_custom_call.1} parent=79 // pred_check_branch
          %1222 = sbr.rel (%p1220) target = $region84
        $region83: #{tpu_custom_call.1} parent=79 // pred_region
          %s1223 = sand.u32 %s186, 1
          %s1224 = scalar_lea.sflag [#allocation6], %s1223
          %s1225 = sand.u32 %s186, 1
          %s1226 = smul.addr %s1225, 16
          %s1227 = scalar_lea.vmem [#allocation5], %s1226
          %1229 = dma.done %s1224, 256
        $region84: #{tpu_custom_call.1} parent=79 // pred_fallthru
          _
      $region80: #{tpu_custom_call.1} parent=5 // pred_fallthru
        _
    $region6: #{tpu_custom_call.1} parent=1 // loop_footer
      %s24 = sadd.s32 1, %s20
    $region7: #{tpu_custom_call.1} parent=1 // loop_footer_branch
      %19 = sbr.rel target = $region3
    $region8: #{tpu_custom_call.1} parent=1 // loop_exit
      _
    %1230 = vsyncpa [#allocation6], 1
    %s1231 = scalar_lea.sflag [#allocation6], 1
    %1232 = vsyncpa %s1231, 1
    %1233 = vsyncpa [#allocation8], 1

</llo_original>
